<compile_context>
chip_gen: v5e
topology: v5e:2x2
jax: 0.10.0
libtpu: 0.0.40
codegen_flags: <defaults>
</compile_context>

<pallas_src>
import math
import jax
import jax.numpy as jnp
from jax.experimental import pallas as pl
from jax.experimental.pallas import tpu as pltpu


# ---------------------------------------------------------------------------
# Hyper-parameters ("o" options of the original module), set deterministically.
# ---------------------------------------------------------------------------
DIM_C = 32                  # o.dim_c
DIM_B = 8                   # o.dim_b
LOSS_S_RECON = 10.0         # o.loss_s_recon
LOSS_MOD_ALIGNMENT = 2.0    # o.loss_mod_alignment
KLD_BETA = 5.0              # hard-coded beta in calc_kld_z_loss

_HALF_LOG_TWO_PI = 0.5 * math.log(2.0 * math.pi)

# Budget for the double-buffered per-tile input working set (conservative so
# the same tiling fits v7x's 64 MiB VMEM as well as v5e/v6e's 128 MiB).
_VMEM_INPUT_BUDGET_BYTES = 24 * 1024 * 1024


def _make_loss_kernel(n_batch, dim_c, loss_s_recon, loss_mod_alignment, n_mod):
    """Returns the fused, batch-tiled loss kernel."""

    inv_n = 1.0 / float(n_batch)
    inv_m = 1.0 / float(n_mod)

    def kernel(
        x_rna_r_ref,    # [TN, D_rna]  f32   (log-rate predictions)
        x_rna_ref,      # [TN, D_rna]  f32   (count targets)
        e_rna_ref,      # [TN, D_rna]  f32   (feature mask)
        x_atac_r_ref,   # [TN, D_atac] f32   (probabilities in (0,1))
        x_atac_ref,     # [TN, D_atac] f32   (binary targets)
        x_label_r_ref,  # [TN, C_lab]  f32   (logits)
        x_label_ref,    # [TN, 1]      i32   (class labels)
        s_r_ref,        # [TN, C_s]    f32   (logits)
        s_ref,          # [TN, 1]      i32   (batch-id labels)
        z_mu_ref,       # [TN, dim_c+dim_b] f32
        z_logvar_ref,   # [TN, dim_c+dim_b] f32
        z_uni_ref,      # [M, TN, dim_c]    f32
        out_ref,        # [1, 1, 1]    f32   (per-core-split partial sum)
        acc_ref,        # [1, 1]       f32   VMEM scratch accumulator
    ):
        t = pl.program_id(1)

        @pl.when(t == 0)
        def _init():
            acc_ref[...] = jnp.zeros_like(acc_ref)

        # ------------------ recon: poisson NLL (full=True) * mask ----------
        xr = x_rna_r_ref[...]
        xt = x_rna_ref[...]
        em = e_rna_ref[...]
        pois = jnp.exp(xr) - xt * xr
        # Stirling refactored to reuse a single log(x):
        #   x*log(x) - x + 0.5*log(2*pi*x) == (x + 0.5)*log(x) - x + 0.5*log(2*pi)
        log_xt = jnp.log(jnp.maximum(xt, 1.0))   # safe where x <= 1 (masked below)
        stirling = jnp.where(
            xt > 1.0, (xt + 0.5) * log_xt - xt + _HALF_LOG_TWO_PI, 0.0)
        loss_rna = ((pois + stirling) * em).sum()

        # ------------------ recon: BCE (atac) ------------------------------
        p = x_atac_r_ref[...]
        tt = x_atac_ref[...]
        logp = jnp.maximum(jnp.log(p), -100.0)          # PyTorch BCE clamp
        log1mp = jnp.maximum(jnp.log(1.0 - p), -100.0)
        # -(t*logp + (1-t)*log1mp) == -(log1mp + t*(logp - log1mp))
        loss_atac = -(log1mp + tt * (logp - log1mp)).sum()

        # ------------------ recon: cross entropy heads ---------------------
        def ce_sum(logits, labels_col):
            m = jnp.max(logits, axis=-1, keepdims=True)
            lse = m + jnp.log(jnp.sum(jnp.exp(logits - m), axis=-1,
                                      keepdims=True))
            cls = jax.lax.broadcasted_iota(jnp.int32, logits.shape, 1)
            picked = jnp.sum(
                jnp.where(cls == labels_col, logits, 0.0),
                axis=-1, keepdims=True)
            return (lse - picked).sum()

        loss_label = ce_sum(x_label_r_ref[...], x_label_ref[...])
        loss_s = ce_sum(s_r_ref[...], s_ref[...])

        # ------------------ KLD(z): fused c/b weighted reduction -----------
        mu = z_mu_ref[...]
        lv = z_logvar_ref[...]
        kld_elem = -0.5 * (1.0 + lv - mu * mu - jnp.exp(lv))
        col = jax.lax.broadcasted_iota(jnp.int32, kld_elem.shape, 1)
        w = jnp.where(col < dim_c, 1.0, KLD_BETA)
        loss_kld = (kld_elem * w).sum()

        # ------------------ consistency (topo) loss ------------------------
        # sum_m ||z_m - mean||^2 == sum_m ||z_m||^2 - ||sum_m z_m||^2 / M
        zs = z_uni_ref[...]                       # [M, TN, dim_c]
        zsum = jnp.sum(zs, axis=0)                # VPU adds only (leading dim)
        loss_topo = (zs * zs).sum() - (zsum * zsum).sum() * inv_m

        partial = (loss_rna + loss_atac + loss_label
                   + loss_s_recon * loss_s
                   + loss_kld
                   + loss_mod_alignment * loss_topo)
        acc_ref[...] = acc_ref[...] + partial

        @pl.when(t == pl.num_programs(1) - 1)
        def _finish():
            out_ref[0] = acc_ref[...] * inv_n

    return kernel


def loss_calculator_forward(x_rna_r, x_rna, e_rna,
                            x_atac_r, x_atac,
                            x_label_r, x_label,
                            s_r, s,
                            z_mu, z_logvar,
                            z_uni_stack,
                            *, tn=None):
    """Pallas implementation of LossCalculator.forward. Returns scalar f32."""
    n = s.shape[0]
    d_rna = x_rna_r.shape[1]
    d_atac = x_atac_r.shape[1]
    c_label = x_label_r.shape[1]
    c_s = s_r.shape[1]
    d_z = z_mu.shape[1]
    n_mod, _, dim_c_z = z_uni_stack.shape

    # TODO(synk): handle batch sizes not divisible by 8 (pad rows + mask).
    assert n % 8 == 0, "batch size must be a multiple of 8"

    # --- batch-tile size from a VMEM budget (v7x-safe) ----------------------
    if tn is None:
        per_row_bytes = 4 * (3 * d_rna + 2 * d_atac + c_label + 1 + c_s + 1
                             + 2 * d_z + n_mod * dim_c_z)
        cap = max(8, _VMEM_INPUT_BUDGET_BYTES // (2 * per_row_bytes))  # x2: dbl buf
        cap = int(min(cap, 1024, n))
        tn = (cap // 8) * 8
        while tn > 8 and n % tn != 0:
            tn -= 8
        tn = max(tn, 8)
    assert tn % 8 == 0 and n % tn == 0, "tile must be an 8-multiple dividing N"

    n_tiles = n // tn
    # Outer "parallel" axis: on v7x the two TensorCores each take half the
    # batch tiles; on v5e/v6e (single TC) it just runs serially (no-op).
    num_splits = 2 if (n_tiles >= 2 and n_tiles % 2 == 0) else 1
    tps = n_tiles // num_splits

    kernel = _make_loss_kernel(n, DIM_C, LOSS_S_RECON, LOSS_MOD_ALIGNMENT,
                               n_mod)

    def _bs(d):
        return pl.BlockSpec((tn, d), lambda c, t: (c * tps + t, 0))

    in_specs = [
        _bs(d_rna), _bs(d_rna), _bs(d_rna),          # rna pred / target / mask
        _bs(d_atac), _bs(d_atac),                    # atac pred / target
        _bs(c_label), _bs(1),                        # label logits / labels
        _bs(c_s), _bs(1),                            # s logits / s labels
        _bs(d_z), _bs(d_z),                          # z_mu / z_logvar
        pl.BlockSpec((n_mod, tn, dim_c_z),
                     lambda c, t: (0, c * tps + t, 0)),   # z_uni stack
    ]
    out_specs = pl.BlockSpec((1, 1, 1), lambda c, t: (c, 0, 0))

    partials = pl.pallas_call(
        kernel,
        out_shape=jax.ShapeDtypeStruct((num_splits, 1, 1), jnp.float32),
        grid_spec=pltpu.PrefetchScalarGridSpec(
            num_scalar_prefetch=0,
            grid=(num_splits, tps),
            in_specs=in_specs,
            out_specs=out_specs,
            scratch_shapes=[pltpu.VMEM((1, 1), jnp.float32)],
        ),
        compiler_params=pltpu.CompilerParams(
            dimension_semantics=("parallel", "arbitrary"),
            vmem_limit_bytes=48 * 1024 * 1024,
        ),
    )(x_rna_r, x_rna, e_rna, x_atac_r, x_atac,
      x_label_r, x_label, s_r, s, z_mu, z_logvar, z_uni_stack)

    # Add the (at most 2) per-core partial sums in plain JAX.
    return partials.sum()


# ---------------------------------------------------------------------------
# Pure-JAX reference (same math, no Pallas) for a sanity check.
# ---------------------------------------------------------------------------
def reference_forward(x_rna_r, x_rna, e_rna, x_atac_r, x_atac,
                      x_label_r, x_label, s_r, s, z_mu, z_logvar, z_uni_stack):
    n = s.shape[0]
    pois = jnp.exp(x_rna_r) - x_rna * x_rna_r
    stirling = jnp.where(
        x_rna > 1.0,
        x_rna * jnp.log(jnp.maximum(x_rna, 1.0)) - x_rna
        + 0.5 * jnp.log(jnp.maximum(2 * math.pi * x_rna, 1.0)),
        0.0)
    loss_rna = ((pois + stirling) * e_rna).sum()
    logp = jnp.maximum(jnp.log(x_atac_r), -100.0)
    log1mp = jnp.maximum(jnp.log(1.0 - x_atac_r), -100.0)
    loss_atac = (-(x_atac * logp + (1.0 - x_atac) * log1mp)).sum()

    def ce_sum(logits, labels):
        lse = jax.scipy.special.logsumexp(logits, axis=-1)
        picked = jnp.take_along_axis(logits, labels, axis=-1)[:, 0]
        return (lse - picked).sum()

    loss_label = ce_sum(x_label_r, x_label)
    loss_s = ce_sum(s_r, s) * LOSS_S_RECON
    loss_recon = (loss_rna + loss_atac + loss_label + loss_s) / n

    kld = -0.5 * (1.0 + z_logvar - z_mu ** 2 - jnp.exp(z_logvar))
    kld_c = kld[:, :DIM_C].sum() / n
    kld_b = kld[:, DIM_C:].sum() / n
    loss_kld = kld_c + KLD_BETA * kld_b

    zmean = z_uni_stack.mean(0, keepdims=True)
    loss_topo = ((z_uni_stack - zmean) ** 2).sum() / n * LOSS_MOD_ALIGNMENT
    return loss_recon + loss_kld + loss_topo


if __name__ == "__main__":
    key = jax.random.PRNGKey(0)
    ks = jax.random.split(key, 12)

    N = 32         # batch (multiple of 8)
    D_RNA = 256    # rna feature dim
    D_ATAC = 384   # atac feature dim
    C_LABEL = 16   # label classes
    C_S = 4        # number of batches (s head classes)
    N_MOD = 2      # modalities contributing to z_uni

    # rna: Poisson head (predictions are log-rates, targets are counts)
    x_rna_r = 0.5 * jax.random.normal(ks[0], (N, D_RNA), jnp.float32)
    x_rna = jnp.floor(7.0 * jax.random.uniform(ks[1], (N, D_RNA),
                                               jnp.float32))   # counts 0..6
    e_rna = (jax.random.uniform(ks[2], (N, D_RNA)) > 0.2).astype(jnp.float32)

    # atac: BCE head (predictions are probabilities)
    x_atac_r = jax.nn.sigmoid(jax.random.normal(ks[3], (N, D_ATAC),
                                                jnp.float32))
    x_atac = (jax.random.uniform(ks[4], (N, D_ATAC)) > 0.5).astype(jnp.float32)

    # label: cross-entropy head
    x_label_r = jax.random.normal(ks[5], (N, C_LABEL), jnp.float32)
    x_label = jax.random.randint(ks[6], (N, 1), 0, C_LABEL, jnp.int32)

    # s (batch indicator) head
    s_r = jax.random.normal(ks[7], (N, C_S), jnp.float32)
    s = jax.random.randint(ks[8], (N, 1), 0, C_S, jnp.int32)

    # latent
    z_mu = jax.random.normal(ks[9], (N, DIM_C + DIM_B), jnp.float32)
    z_logvar = 0.1 * jax.random.normal(ks[10], (N, DIM_C + DIM_B), jnp.float32)

    # z_uni dict -> stacked [n_mod, N, dim_c]  (dict glue done in plain JAX)
    z_uni_stack = jax.random.normal(ks[11], (N_MOD, N, DIM_C), jnp.float32)

    # tn=8 forces the multi-tile path: grid (2, 2) — parallel core split + an
    # "arbitrary" accumulation axis — at these toy sizes.
    loss = loss_calculator_forward(
        x_rna_r, x_rna, e_rna, x_atac_r, x_atac,
        x_label_r, x_label, s_r, s, z_mu, z_logvar, z_uni_stack, tn=8)
    loss = jax.block_until_ready(loss)

    ref = reference_forward(
        x_rna_r, x_rna, e_rna, x_atac_r, x_atac,
        x_label_r, x_label, s_r, s, z_mu, z_logvar, z_uni_stack)
    ref = jax.block_until_ready(ref)

    assert jnp.isfinite(loss), "kernel produced non-finite loss"
    assert abs(float(loss) - float(ref)) <= 2e-3 * max(1.0, abs(float(ref))), \
        f"mismatch: pallas={float(loss)} ref={float(ref)}"

    print("KERNEL_OK")
</pallas_src>

<mosaic_0001>
module attributes {stable_mosaic.version = 11 : i64} {
  func.func @kernel(%arg0: i32, %arg1: i32, %arg2: memref<8x256xf32, #tpu.memory_space<vmem>>, %arg3: memref<8x256xf32, #tpu.memory_space<vmem>>, %arg4: memref<8x256xf32, #tpu.memory_space<vmem>>, %arg5: memref<8x384xf32, #tpu.memory_space<vmem>>, %arg6: memref<8x384xf32, #tpu.memory_space<vmem>>, %arg7: memref<8x16xf32, #tpu.memory_space<vmem>>, %arg8: memref<8x1xi32, #tpu.memory_space<vmem>>, %arg9: memref<8x4xf32, #tpu.memory_space<vmem>>, %arg10: memref<8x1xi32, #tpu.memory_space<vmem>>, %arg11: memref<8x40xf32, #tpu.memory_space<vmem>>, %arg12: memref<8x40xf32, #tpu.memory_space<vmem>>, %arg13: memref<2x8x32xf32, #tpu.memory_space<vmem>>, %arg14: memref<1x1x1xf32, #tpu.memory_space<vmem>>, %arg15: memref<1x1xf32, #tpu.memory_space<vmem>>) attributes {dimension_semantics = [#tpu.dimension_semantics<parallel>, #tpu.dimension_semantics<arbitrary>], iteration_bounds = array<i64: 2, 2>, scalar_prefetch = 0 : i64, scratch_operands = 1 : i64, tpu.core_type = #tpu.core_type<tc>, window_params = [{transform_indices = @transform_0, window_bounds = array<i64: 8, 256>}, {transform_indices = @transform_1, window_bounds = array<i64: 8, 256>}, {transform_indices = @transform_2, window_bounds = array<i64: 8, 256>}, {transform_indices = @transform_3, window_bounds = array<i64: 8, 384>}, {transform_indices = @transform_4, window_bounds = array<i64: 8, 384>}, {transform_indices = @transform_5, window_bounds = array<i64: 8, 16>}, {transform_indices = @transform_6, window_bounds = array<i64: 8, 1>}, {transform_indices = @transform_7, window_bounds = array<i64: 8, 4>}, {transform_indices = @transform_8, window_bounds = array<i64: 8, 1>}, {transform_indices = @transform_9, window_bounds = array<i64: 8, 40>}, {transform_indices = @transform_10, window_bounds = array<i64: 8, 40>}, {transform_indices = @transform_11, window_bounds = array<i64: 2, 8, 32>}, {transform_indices = @transform_12, window_bounds = array<i64: 1, 1, 1>}]} {
    %c0_i32 = arith.constant 0 : i32
    %0 = arith.cmpi eq, %arg1, %c0_i32 : i32
    %1 = arith.extui %0 : i1 to i32
    %c0_i32_0 = arith.constant 0 : i32
    %2 = arith.cmpi ne, %1, %c0_i32_0 : i32
    scf.if %2 {
      %cst_61 = arith.constant 0.000000e+00 : f32
      %141 = vector.broadcast %cst_61 : f32 to vector<1x1xf32>
      %c0_62 = arith.constant 0 : index
      %c0_63 = arith.constant 0 : index
      %142 = vector.load %arg15[%c0_62, %c0_63] : memref<1x1xf32, #tpu.memory_space<vmem>>, vector<1x1xf32>
      tpu.vector_store %arg15[%c0_62, %c0_63], %141 {strides = array<i32>} : memref<1x1xf32, #tpu.memory_space<vmem>>, vector<1x1xf32>,
    } else {
    }
    %c0 = arith.constant 0 : index
    %c0_1 = arith.constant 0 : index
    %3 = vector.load %arg2[%c0, %c0_1] : memref<8x256xf32, #tpu.memory_space<vmem>>, vector<8x256xf32>
    %c0_2 = arith.constant 0 : index
    %c0_3 = arith.constant 0 : index
    %4 = vector.load %arg3[%c0_2, %c0_3] : memref<8x256xf32, #tpu.memory_space<vmem>>, vector<8x256xf32>
    %c0_4 = arith.constant 0 : index
    %c0_5 = arith.constant 0 : index
    %5 = vector.load %arg4[%c0_4, %c0_5] : memref<8x256xf32, #tpu.memory_space<vmem>>, vector<8x256xf32>
    %6 = math.exp %3 : vector<8x256xf32>
    %7 = arith.mulf %4, %3 : vector<8x256xf32>
    %8 = arith.subf %6, %7 : vector<8x256xf32>
    %cst = arith.constant 1.000000e+00 : f32
    %9 = vector.broadcast %cst : f32 to vector<8x256xf32>
    %10 = arith.maximumf %4, %9 : vector<8x256xf32>
    %11 = math.log %10 : vector<8x256xf32>
    %cst_6 = arith.constant 1.000000e+00 : f32
    %12 = vector.broadcast %cst_6 : f32 to vector<8x256xf32>
    %13 = arith.cmpf ogt, %4, %12 : vector<8x256xf32>
    %cst_7 = arith.constant 5.000000e-01 : f32
    %14 = vector.broadcast %cst_7 : f32 to vector<8x256xf32>
    %15 = arith.addf %4, %14 : vector<8x256xf32>
    %16 = arith.mulf %15, %11 : vector<8x256xf32>
    %17 = arith.subf %16, %4 : vector<8x256xf32>
    %cst_8 = arith.constant 0.918938517 : f32
    %18 = vector.broadcast %cst_8 : f32 to vector<8x256xf32>
    %19 = arith.addf %17, %18 : vector<8x256xf32>
    %cst_9 = arith.constant 0.000000e+00 : f32
    %20 = vector.broadcast %cst_9 : f32 to vector<8x256xf32>
    %21 = arith.select %13, %19, %20 : vector<8x256xi1>, vector<8x256xf32>
    %22 = arith.addf %8, %21 : vector<8x256xf32>
    %23 = arith.mulf %22, %5 : vector<8x256xf32>
    %24 = vector.shape_cast %23 : vector<8x256xf32> to vector<1x8x256xf32>
    %cst_10 = arith.constant dense<0.000000e+00> : vector<1xf32>
    %25 = vector.multi_reduction <add>, %24, %cst_10 [1, 2] : vector<1x8x256xf32> to vector<1xf32>
    %26 = vector.shape_cast %25 : vector<1xf32> to vector<1x1x1xf32>
    %27 = vector.extract %26[0, 0, 0] : f32 from vector<1x1x1xf32>
    %c0_11 = arith.constant 0 : index
    %c0_12 = arith.constant 0 : index
    %28 = vector.load %arg5[%c0_11, %c0_12] : memref<8x384xf32, #tpu.memory_space<vmem>>, vector<8x384xf32>
    %c0_13 = arith.constant 0 : index
    %c0_14 = arith.constant 0 : index
    %29 = vector.load %arg6[%c0_13, %c0_14] : memref<8x384xf32, #tpu.memory_space<vmem>>, vector<8x384xf32>
    %30 = math.log %28 : vector<8x384xf32>
    %cst_15 = arith.constant -1.000000e+02 : f32
    %31 = vector.broadcast %cst_15 : f32 to vector<8x384xf32>
    %32 = arith.maximumf %30, %31 : vector<8x384xf32>
    %cst_16 = arith.constant 1.000000e+00 : f32
    %33 = vector.broadcast %cst_16 : f32 to vector<8x384xf32>
    %34 = arith.subf %33, %28 : vector<8x384xf32>
    %35 = math.log %34 : vector<8x384xf32>
    %cst_17 = arith.constant -1.000000e+02 : f32
    %36 = vector.broadcast %cst_17 : f32 to vector<8x384xf32>
    %37 = arith.maximumf %35, %36 : vector<8x384xf32>
    %38 = arith.subf %32, %37 : vector<8x384xf32>
    %39 = arith.mulf %29, %38 : vector<8x384xf32>
    %40 = arith.addf %37, %39 : vector<8x384xf32>
    %41 = vector.shape_cast %40 : vector<8x384xf32> to vector<1x8x384xf32>
    %cst_18 = arith.constant dense<0.000000e+00> : vector<1xf32>
    %42 = vector.multi_reduction <add>, %41, %cst_18 [1, 2] : vector<1x8x384xf32> to vector<1xf32>
    %43 = vector.shape_cast %42 : vector<1xf32> to vector<1x1x1xf32>
    %44 = vector.extract %43[0, 0, 0] : f32 from vector<1x1x1xf32>
    %cst_19 = arith.constant 0.000000e+00 : f32
    %45 = arith.subf %cst_19, %44 : f32
    %c0_20 = arith.constant 0 : index
    %c0_21 = arith.constant 0 : index
    %46 = vector.load %arg7[%c0_20, %c0_21] : memref<8x16xf32, #tpu.memory_space<vmem>>, vector<8x16xf32>
    %c0_22 = arith.constant 0 : index
    %c0_23 = arith.constant 0 : index
    %47 = vector.load %arg8[%c0_22, %c0_23] : memref<8x1xi32, #tpu.memory_space<vmem>>, vector<8x1xi32>
    %cst_24 = arith.constant dense<0xFF800000> : vector<8xf32>
    %48 = vector.multi_reduction <maximumf>, %46, %cst_24 [1] : vector<8x16xf32> to vector<8xf32>
    %49 = vector.shape_cast %48 : vector<8xf32> to vector<8x1xf32>
    %50 = vector.broadcast %49 : vector<8x1xf32> to vector<8x16xf32>
    %51 = arith.subf %46, %50 : vector<8x16xf32>
    %52 = math.exp %51 : vector<8x16xf32>
    %cst_25 = arith.constant dense<0.000000e+00> : vector<8xf32>
    %53 = vector.multi_reduction <add>, %52, %cst_25 [1] : vector<8x16xf32> to vector<8xf32>
    %54 = vector.shape_cast %53 : vector<8xf32> to vector<8x1xf32>
    %55 = math.log %54 : vector<8x1xf32>
    %56 = arith.addf %49, %55 : vector<8x1xf32>
    %57 = tpu.iota {dimensions = array<i32: 1>} : vector<8x16xi32>
    %58 = vector.broadcast %47 : vector<8x1xi32> to vector<8x16xi32>
    %59 = arith.cmpi eq, %57, %58 : vector<8x16xi32>
    %cst_26 = arith.constant 0.000000e+00 : f32
    %60 = vector.broadcast %cst_26 : f32 to vector<8x16xf32>
    %61 = arith.select %59, %46, %60 : vector<8x16xi1>, vector<8x16xf32>
    %cst_27 = arith.constant dense<0.000000e+00> : vector<8xf32>
    %62 = vector.multi_reduction <add>, %61, %cst_27 [1] : vector<8x16xf32> to vector<8xf32>
    %63 = vector.shape_cast %62 : vector<8xf32> to vector<8x1xf32>
    %64 = arith.subf %56, %63 : vector<8x1xf32>
    %65 = vector.shape_cast %64 : vector<8x1xf32> to vector<1x8x1xf32>
    %cst_28 = arith.constant dense<0.000000e+00> : vector<1xf32>
    %66 = vector.multi_reduction <add>, %65, %cst_28 [1, 2] : vector<1x8x1xf32> to vector<1xf32>
    %67 = vector.shape_cast %66 : vector<1xf32> to vector<1x1x1xf32>
    %68 = vector.extract %67[0, 0, 0] : f32 from vector<1x1x1xf32>
    %c0_29 = arith.constant 0 : index
    %c0_30 = arith.constant 0 : index
    %69 = vector.load %arg9[%c0_29, %c0_30] : memref<8x4xf32, #tpu.memory_space<vmem>>, vector<8x4xf32>
    %c0_31 = arith.constant 0 : index
    %c0_32 = arith.constant 0 : index
    %70 = vector.load %arg10[%c0_31, %c0_32] : memref<8x1xi32, #tpu.memory_space<vmem>>, vector<8x1xi32>
    %cst_33 = arith.constant dense<0xFF800000> : vector<8xf32>
    %71 = vector.multi_reduction <maximumf>, %69, %cst_33 [1] : vector<8x4xf32> to vector<8xf32>
    %72 = vector.shape_cast %71 : vector<8xf32> to vector<8x1xf32>
    %73 = vector.broadcast %72 : vector<8x1xf32> to vector<8x4xf32>
    %74 = arith.subf %69, %73 : vector<8x4xf32>
    %75 = math.exp %74 : vector<8x4xf32>
    %cst_34 = arith.constant dense<0.000000e+00> : vector<8xf32>
    %76 = vector.multi_reduction <add>, %75, %cst_34 [1] : vector<8x4xf32> to vector<8xf32>
    %77 = vector.shape_cast %76 : vector<8xf32> to vector<8x1xf32>
    %78 = math.log %77 : vector<8x1xf32>
    %79 = arith.addf %72, %78 : vector<8x1xf32>
    %80 = tpu.iota {dimensions = array<i32: 1>} : vector<8x4xi32>
    %81 = vector.broadcast %70 : vector<8x1xi32> to vector<8x4xi32>
    %82 = arith.cmpi eq, %80, %81 : vector<8x4xi32>
    %cst_35 = arith.constant 0.000000e+00 : f32
    %83 = vector.broadcast %cst_35 : f32 to vector<8x4xf32>
    %84 = arith.select %82, %69, %83 : vector<8x4xi1>, vector<8x4xf32>
    %cst_36 = arith.constant dense<0.000000e+00> : vector<8xf32>
    %85 = vector.multi_reduction <add>, %84, %cst_36 [1] : vector<8x4xf32> to vector<8xf32>
    %86 = vector.shape_cast %85 : vector<8xf32> to vector<8x1xf32>
    %87 = arith.subf %79, %86 : vector<8x1xf32>
    %88 = vector.shape_cast %87 : vector<8x1xf32> to vector<1x8x1xf32>
    %cst_37 = arith.constant dense<0.000000e+00> : vector<1xf32>
    %89 = vector.multi_reduction <add>, %88, %cst_37 [1, 2] : vector<1x8x1xf32> to vector<1xf32>
    %90 = vector.shape_cast %89 : vector<1xf32> to vector<1x1x1xf32>
    %91 = vector.extract %90[0, 0, 0] : f32 from vector<1x1x1xf32>
    %c0_38 = arith.constant 0 : index
    %c0_39 = arith.constant 0 : index
    %92 = vector.load %arg11[%c0_38, %c0_39] : memref<8x40xf32, #tpu.memory_space<vmem>>, vector<8x40xf32>
    %c0_40 = arith.constant 0 : index
    %c0_41 = arith.constant 0 : index
    %93 = vector.load %arg12[%c0_40, %c0_41] : memref<8x40xf32, #tpu.memory_space<vmem>>, vector<8x40xf32>
    %cst_42 = arith.constant 1.000000e+00 : f32
    %94 = vector.broadcast %cst_42 : f32 to vector<8x40xf32>
    %95 = arith.addf %94, %93 : vector<8x40xf32>
    %96 = arith.mulf %92, %92 : vector<8x40xf32>
    %97 = arith.subf %95, %96 : vector<8x40xf32>
    %98 = math.exp %93 : vector<8x40xf32>
    %99 = arith.subf %97, %98 : vector<8x40xf32>
    %cst_43 = arith.constant -5.000000e-01 : f32
    %100 = vector.broadcast %cst_43 : f32 to vector<8x40xf32>
    %101 = arith.mulf %100, %99 : vector<8x40xf32>
    %102 = tpu.iota {dimensions = array<i32: 1>} : vector<8x40xi32>
    %c32_i32 = arith.constant 32 : i32
    %103 = vector.broadcast %c32_i32 : i32 to vector<8x40xi32>
    %104 = arith.cmpi slt, %102, %103 : vector<8x40xi32>
    %cst_44 = arith.constant 1.000000e+00 : f32
    %cst_45 = arith.constant 5.000000e+00 : f32
    %105 = vector.broadcast %cst_44 : f32 to vector<8x40xf32>
    %106 = vector.broadcast %cst_45 : f32 to vector<8x40xf32>
    %107 = arith.select %104, %105, %106 : vector<8x40xi1>, vector<8x40xf32>
    %108 = arith.mulf %101, %107 : vector<8x40xf32>
    %109 = vector.shape_cast %108 : vector<8x40xf32> to vector<1x8x40xf32>
    %cst_46 = arith.constant dense<0.000000e+00> : vector<1xf32>
    %110 = vector.multi_reduction <add>, %109, %cst_46 [1, 2] : vector<1x8x40xf32> to vector<1xf32>
    %111 = vector.shape_cast %110 : vector<1xf32> to vector<1x1x1xf32>
    %112 = vector.extract %111[0, 0, 0] : f32 from vector<1x1x1xf32>
    %c0_47 = arith.constant 0 : index
    %c0_48 = arith.constant 0 : index
    %c0_49 = arith.constant 0 : index
    %113 = vector.load %arg13[%c0_47, %c0_48, %c0_49] : memref<2x8x32xf32, #tpu.memory_space<vmem>>, vector<2x8x32xf32>
    %cst_50 = arith.constant dense<0.000000e+00> : vector<8x32xf32>
    %114 = vector.multi_reduction <add>, %113, %cst_50 [0] : vector<2x8x32xf32> to vector<8x32xf32>
    %115 = arith.mulf %113, %113 : vector<2x8x32xf32>
    %116 = vector.shape_cast %115 : vector<2x8x32xf32> to vector<1x2x8x32xf32>
    %cst_51 = arith.constant dense<0.000000e+00> : vector<1xf32>
    %117 = vector.multi_reduction <add>, %116, %cst_51 [1, 2, 3] : vector<1x2x8x32xf32> to vector<1xf32>
    %118 = vector.shape_cast %117 : vector<1xf32> to vector<1x1x1x1xf32>
    %119 = vector.extract %118[0, 0, 0, 0] : f32 from vector<1x1x1x1xf32>
    %120 = arith.mulf %114, %114 : vector<8x32xf32>
    %121 = vector.shape_cast %120 : vector<8x32xf32> to vector<1x8x32xf32>
    %cst_52 = arith.constant dense<0.000000e+00> : vector<1xf32>
    %122 = vector.multi_reduction <add>, %121, %cst_52 [1, 2] : vector<1x8x32xf32> to vector<1xf32>
    %123 = vector.shape_cast %122 : vector<1xf32> to vector<1x1x1xf32>
    %124 = vector.extract %123[0, 0, 0] : f32 from vector<1x1x1xf32>
    %cst_53 = arith.constant 5.000000e-01 : f32
    %125 = arith.mulf %124, %cst_53 : f32
    %126 = arith.subf %119, %125 : f32
    %127 = arith.addf %27, %45 : f32
    %128 = arith.addf %127, %68 : f32
    %cst_54 = arith.constant 1.000000e+01 : f32
    %129 = arith.mulf %cst_54, %91 : f32
    %130 = arith.addf %128, %129 : f32
    %131 = arith.addf %130, %112 : f32
    %cst_55 = arith.constant 2.000000e+00 : f32
    %132 = arith.mulf %cst_55, %126 : f32
    %133 = arith.addf %131, %132 : f32
    %c0_56 = arith.constant 0 : index
    %c0_57 = arith.constant 0 : index
    %134 = vector.load %arg15[%c0_56, %c0_57] : memref<1x1xf32, #tpu.memory_space<vmem>>, vector<1x1xf32>
    %135 = vector.broadcast %133 : f32 to vector<1x1xf32>
    %136 = arith.addf %134, %135 : vector<1x1xf32>
    %c0_58 = arith.constant 0 : index
    %c0_59 = arith.constant 0 : index
    %137 = vector.load %arg15[%c0_58, %c0_59] : memref<1x1xf32, #tpu.memory_space<vmem>>, vector<1x1xf32>
    tpu.vector_store %arg15[%c0_58, %c0_59], %136 {strides = array<i32>} : memref<1x1xf32, #tpu.memory_space<vmem>>, vector<1x1xf32>,
    %c1_i32 = arith.constant 1 : i32
    %138 = arith.cmpi eq, %arg1, %c1_i32 : i32
    %139 = arith.extui %138 : i1 to i32
    %c0_i32_60 = arith.constant 0 : i32
    %140 = arith.cmpi ne, %139, %c0_i32_60 : i32
    scf.if %140 {
      %c0_61 = arith.constant 0 : index
      %c0_62 = arith.constant 0 : index
      %141 = vector.load %arg15[%c0_61, %c0_62] : memref<1x1xf32, #tpu.memory_space<vmem>>, vector<1x1xf32>
      %cst_63 = arith.constant 3.125000e-02 : f32
      %142 = vector.broadcast %cst_63 : f32 to vector<1x1xf32>
      %143 = arith.mulf %141, %142 : vector<1x1xf32>
      %c0_64 = arith.constant 0 : index
      %c0_65 = arith.constant 0 : index
      %c0_66 = arith.constant 0 : index
      %144 = vector.load %arg14[%c0_64, %c0_65, %c0_66] : memref<1x1x1xf32, #tpu.memory_space<vmem>>, vector<1x1x1xf32>
      %145 = vector.shape_cast %144 : vector<1x1x1xf32> to vector<1x1xf32>
      %146 = vector.shape_cast %143 : vector<1x1xf32> to vector<1x1x1xf32>
      tpu.vector_store %arg14[%c0_64, %c0_65, %c0_66], %146 {strides = array<i32>} : memref<1x1x1xf32, #tpu.memory_space<vmem>>, vector<1x1x1xf32>,
    } else {
    }
    return
  }
  func.func @transform_0(%arg0: i32, %arg1: i32) -> (i32, i32) {
    %c2_i32 = arith.constant 2 : i32
    %0 = arith.muli %arg0, %c2_i32 : i32
    %1 = arith.addi %0, %arg1 : i32
    %c0_i32 = arith.constant 0 : i32
    %c0_i32_0 = arith.constant 0 : i32
    return %1, %c0_i32 : i32, i32
  }
  func.func @transform_1(%arg0: i32, %arg1: i32) -> (i32, i32) {
    %c2_i32 = arith.constant 2 : i32
    %0 = arith.muli %arg0, %c2_i32 : i32
    %1 = arith.addi %0, %arg1 : i32
    %c0_i32 = arith.constant 0 : i32
    %c0_i32_0 = arith.constant 0 : i32
    return %1, %c0_i32 : i32, i32
  }
  func.func @transform_2(%arg0: i32, %arg1: i32) -> (i32, i32) {
    %c2_i32 = arith.constant 2 : i32
    %0 = arith.muli %arg0, %c2_i32 : i32
    %1 = arith.addi %0, %arg1 : i32
    %c0_i32 = arith.constant 0 : i32
    %c0_i32_0 = arith.constant 0 : i32
    return %1, %c0_i32 : i32, i32
  }
  func.func @transform_3(%arg0: i32, %arg1: i32) -> (i32, i32) {
    %c2_i32 = arith.constant 2 : i32
    %0 = arith.muli %arg0, %c2_i32 : i32
    %1 = arith.addi %0, %arg1 : i32
    %c0_i32 = arith.constant 0 : i32
    %c0_i32_0 = arith.constant 0 : i32
    return %1, %c0_i32 : i32, i32
  }
  func.func @transform_4(%arg0: i32, %arg1: i32) -> (i32, i32) {
    %c2_i32 = arith.constant 2 : i32
    %0 = arith.muli %arg0, %c2_i32 : i32
    %1 = arith.addi %0, %arg1 : i32
    %c0_i32 = arith.constant 0 : i32
    %c0_i32_0 = arith.constant 0 : i32
    return %1, %c0_i32 : i32, i32
  }
  func.func @transform_5(%arg0: i32, %arg1: i32) -> (i32, i32) {
    %c2_i32 = arith.constant 2 : i32
    %0 = arith.muli %arg0, %c2_i32 : i32
    %1 = arith.addi %0, %arg1 : i32
    %c0_i32 = arith.constant 0 : i32
    %c0_i32_0 = arith.constant 0 : i32
    return %1, %c0_i32 : i32, i32
  }
  func.func @transform_6(%arg0: i32, %arg1: i32) -> (i32, i32) {
    %c2_i32 = arith.constant 2 : i32
    %0 = arith.muli %arg0, %c2_i32 : i32
    %1 = arith.addi %0, %arg1 : i32
    %c0_i32 = arith.constant 0 : i32
    %c0_i32_0 = arith.constant 0 : i32
    return %1, %c0_i32 : i32, i32
  }
  func.func @transform_7(%arg0: i32, %arg1: i32) -> (i32, i32) {
    %c2_i32 = arith.constant 2 : i32
    %0 = arith.muli %arg0, %c2_i32 : i32
    %1 = arith.addi %0, %arg1 : i32
    %c0_i32 = arith.constant 0 : i32
    %c0_i32_0 = arith.constant 0 : i32
    return %1, %c0_i32 : i32, i32
  }
  func.func @transform_8(%arg0: i32, %arg1: i32) -> (i32, i32) {
    %c2_i32 = arith.constant 2 : i32
    %0 = arith.muli %arg0, %c2_i32 : i32
    %1 = arith.addi %0, %arg1 : i32
    %c0_i32 = arith.constant 0 : i32
    %c0_i32_0 = arith.constant 0 : i32
    return %1, %c0_i32 : i32, i32
  }
  func.func @transform_9(%arg0: i32, %arg1: i32) -> (i32, i32) {
    %c2_i32 = arith.constant 2 : i32
    %0 = arith.muli %arg0, %c2_i32 : i32
    %1 = arith.addi %0, %arg1 : i32
    %c0_i32 = arith.constant 0 : i32
    %c0_i32_0 = arith.constant 0 : i32
    return %1, %c0_i32 : i32, i32
  }
  func.func @transform_10(%arg0: i32, %arg1: i32) -> (i32, i32) {
    %c2_i32 = arith.constant 2 : i32
    %0 = arith.muli %arg0, %c2_i32 : i32
    %1 = arith.addi %0, %arg1 : i32
    %c0_i32 = arith.constant 0 : i32
    %c0_i32_0 = arith.constant 0 : i32
    return %1, %c0_i32 : i32, i32
  }
  func.func @transform_11(%arg0: i32, %arg1: i32) -> (i32, i32, i32) {
    %c2_i32 = arith.constant 2 : i32
    %0 = arith.muli %arg0, %c2_i32 : i32
    %1 = arith.addi %0, %arg1 : i32
    %c0_i32 = arith.constant 0 : i32
    %c0_i32_0 = arith.constant 0 : i32
    %c0_i32_1 = arith.constant 0 : i32
    return %c0_i32, %1, %c0_i32_0 : i32, i32, i32
  }
  func.func @transform_12(%arg0: i32, %arg1: i32) -> (i32, i32, i32) {
    %c0_i32 = arith.constant 0 : i32
    %c0_i32_0 = arith.constant 0 : i32
    %c0_i32_1 = arith.constant 0 : i32
    return %arg0, %c0_i32, %c0_i32_0 : i32, i32, i32
  }
}

</mosaic_0001>

<llo_original>
// kernel: tpu_custom_call.1
$region0: #{tpu_custom_call.1}
  #allocation0 [shape = 'u32[]', space=smem, size = 0x4, offset = 0x4, fixed_abs, tag = 'smem constant byte address 0x4 - core index']
  #allocation1 [shape = 'u32[72,128]{1,0:T(1,128)}', space=vmem, size = 0x9000, scoped, tag = 'internal scratch']
  #allocation2 [shape = 'f32[1,1]{1,0:T(1,128)}', space=vmem, size = 0x200, scoped, tag = 'scratch operand']
  %s0 = inlined_call_operand.vmem [shape: f32[32,256], index: 0, kind: input, shape index: {}]
  %s1 = inlined_call_operand.vmem [shape: f32[32,256], index: 1, kind: input, shape index: {}]
  %s2 = inlined_call_operand.hbm [shape: f32[32,256], index: 2, kind: input, shape index: {}]
  %s3 = inlined_call_operand.hbm [shape: f32[32,384], index: 3, kind: input, shape index: {}]
  %s4 = inlined_call_operand.hbm [shape: f32[32,384], index: 4, kind: input, shape index: {}]
  %s5 = inlined_call_operand.vmem [shape: f32[32,16], index: 5, kind: input, shape index: {}]
  %s6 = inlined_call_operand.vmem [shape: s32[32,1], index: 6, kind: input, shape index: {}]
  %s7 = inlined_call_operand.vmem [shape: f32[32,4], index: 7, kind: input, shape index: {}]
  %s8 = inlined_call_operand.vmem [shape: s32[32,1], index: 8, kind: input, shape index: {}]
  %s9 = inlined_call_operand.hbm [shape: f32[32,40], index: 9, kind: input, shape index: {}]
  %s10 = inlined_call_operand.hbm [shape: f32[32,40], index: 10, kind: input, shape index: {}]
  %s11 = inlined_call_operand.hbm [shape: f32[2,32,32], index: 11, kind: input, shape index: {}]
  %s12 = inlined_call_operand.vmem [shape: f32[2,1,1], index: 12, kind: output, shape index: {}]
  %s13 = sld [smem:[#allocation0]]
  $region113: #{tpu_custom_call.1} parent=0
    _
  %s15 = ssub.s32 1, %s13
  %s16 = scalar_select 0, %s15, %s13
  $region1: #{tpu_custom_call.1} parent=0
    #allocation3 [shape = 'u8[16384]{0}', space=vmem, size = 0x4000, scoped, tag = 'input window, operand 2']
    #allocation4 [shape = 's32[2]{0}', space=sflag, size = 0x8, scoped, tag = 'scoped memory for tpu_custom_call.1']
    #allocation5 [shape = 'u8[24576]{0}', space=vmem, size = 0x6000, scoped, tag = 'input window, operand 3']
    #allocation6 [shape = 's32[2]{0}', space=sflag, size = 0x8, scoped, tag = 'scoped memory for tpu_custom_call.1']
    #allocation7 [shape = 'u8[24576]{0}', space=vmem, size = 0x6000, scoped, tag = 'input window, operand 4']
    #allocation8 [shape = 'u8[8192]{0}', space=vmem, size = 0x2000, scoped, tag = 'input window, operand 9']
    #allocation9 [shape = 's32[2]{0}', space=sflag, size = 0x8, scoped, tag = 'scoped memory for tpu_custom_call.1']
    #allocation10 [shape = 'u8[8192]{0}', space=vmem, size = 0x2000, scoped, tag = 'input window, operand 10']
    #allocation11 [shape = 'u8[16384]{0}', space=vmem, size = 0x4000, scoped, tag = 'input window, operand 11']
    #allocation12 [shape = 's32[2]{0}', space=sflag, size = 0x8, scoped, tag = 'scoped memory for tpu_custom_call.1']
    %17 = vsyncpa [#allocation4], 0
    %s18 = scalar_lea.sflag [#allocation4], 1
    %19 = vsyncpa %s18, 0
    %20 = vsyncpa [#allocation6], 0
    %s21 = scalar_lea.sflag [#allocation6], 1
    %22 = vsyncpa %s21, 0
    %23 = vsyncpa [#allocation9], 0
    %s24 = scalar_lea.sflag [#allocation9], 1
    %25 = vsyncpa %s24, 0
    %26 = vsyncpa [#allocation12], 0
    %s27 = scalar_lea.sflag [#allocation12], 1
    %28 = vsyncpa %s27, 0
    loop: start=0, step=1, limit=6
    $region2: #{tpu_custom_call.1} parent=1 // loop_pre_header
      _
    $region3: #{tpu_custom_call.1} parent=1 // loop_header
      %s30 = sphi 0, %s34
      %p31 = scmp.ge.s32.totalorder %s30, 6
      %s37 = sphi 0, %s49
      %s38 = sphi 0, %s45
      %s39 = sphi 0, %s37
      %s40 = sphi 0, %s38
      %s41 = sphi 0, %s39
      %s42 = sphi 0, %s40
      %s56 = sphi 0, %s58
      %s59 = sphi 0, %s56
      %s60 = sphi 0, %s59
      %s76 = sphi 0, %s60
      %s86 = sphi 0, %s88
      %s89 = sphi 0, %s86
      %s90 = sphi 0, %s89
      %s106 = sphi 0, %s90
      %s116 = sphi 0, %s118
      %s119 = sphi 0, %s116
      %s120 = sphi 0, %s119
      %s136 = sphi 0, %s120
      %s146 = sphi 0, %s148
      %s149 = sphi 0, %s146
      %s150 = sphi 0, %s149
      %s166 = sphi 0, %s150
      %s176 = sphi 0, %s178
      %s179 = sphi 0, %s176
      %s180 = sphi 0, %s179
      %s196 = sphi 0, %s180
      %s206 = sphi 0, %s208
      %s209 = sphi 0, %s206
      %s210 = sphi 0, %s209
      %s226 = sphi 0, %s210
      %s236 = sphi 0, %s238
      %s239 = sphi 0, %s236
      %s240 = sphi 0, %s239
      %s256 = sphi 0, %s240
      %s266 = sphi 0, %s268
      %s269 = sphi 0, %s266
      %s270 = sphi 0, %s269
      %s286 = sphi 0, %s270
      %s296 = sphi 0, %s298
      %s299 = sphi 0, %s296
      %s300 = sphi 0, %s299
      %s316 = sphi 0, %s300
      %s326 = sphi 0, %s328
      %s329 = sphi 0, %s326
      %s330 = sphi 0, %s329
      %s346 = sphi 0, %s330
      %s356 = sphi 0, %s358
      %s359 = sphi 0, %s356
      %s360 = sphi 0, %s359
      %s376 = sphi 0, %s360
      %s386 = sphi 0, %s388
      %s389 = sphi 0, %s386
      %s390 = sphi 0, %s389
      %s406 = sphi 0, %s390
      %s412 = sphi 0, %s414
      %s415 = sphi 0, %s412
      %s416 = sphi 0, %s415
      %s432 = sphi 0, %s416
    $region4: #{tpu_custom_call.1} parent=1 // loop_header_branch
      %33 = sbr.rel (%p31) target = $region8
    $region5: #{tpu_custom_call.1} parent=1 // loop_body
      %s35 = ssub.s32 %s30, 1
      %s36 = ssub.s32 %s30, 2
      %s43 = sadd.s32 1, %s38
      %p44 = scmp.ge.s32.totalorder %s43, 2
      %s45 = scalar_select %p44, 0, %s43
      %s46 = sadd.s32 1, %s37
      %s47 = scalar_select %p44, %s46, %s37
      %p48 = scmp.ge.s32.totalorder %s47, 2
      %s49 = scalar_select %p48, 0, %s47
      %s50 = smul.u32 %s37, 2
      %s51 = sadd.s32 %s50, %s38
      %s52 = smul.u32 %s49, 2
      %s53 = sadd.s32 %s52, %s45
      %s54 = ssub.s32 %s51, %s53
      %p55 = scmp.eq.s32.totalorder %s54, 0
      %s57 = sadd.s32 %s56, 1
      %s58 = scalar_select %p55, %s56, %s57
      %p61 = pneg %p55
      %p62 = scmp.eq.s32.totalorder %s30, 3
      %p63 = por %p61, %p62
      %p64 = scmp.ne.s32.totalorder %s56, %s59
      %p65 = scmp.eq.s32.totalorder %s30, 0
      %p66 = por %p64, %p65
      %p67 = scmp.ne.s32.totalorder %s56, %s59
      %p68 = scmp.eq.s32.totalorder %s35, 3
      %p69 = por %p67, %p68
      %p70 = scmp.ne.s32.totalorder %s59, %s60
      %p71 = scmp.eq.s32.totalorder %s35, 0
      %p72 = por %p70, %p71
      %p73 = scmp.ne.s32.totalorder %s59, %s60
      %p74 = scmp.eq.s32.totalorder %s36, 3
      %p75 = por %p73, %p74
      %p77 = scmp.ne.s32.totalorder %s60, %s76
      %p78 = scmp.eq.s32.totalorder %s36, 0
      %p79 = por %p77, %p78
      %s80 = smul.u32 %s37, 2
      %s81 = sadd.s32 %s80, %s38
      %s82 = smul.u32 %s49, 2
      %s83 = sadd.s32 %s82, %s45
      %s84 = ssub.s32 %s81, %s83
      %p85 = scmp.eq.s32.totalorder %s84, 0
      %s87 = sadd.s32 %s86, 1
      %s88 = scalar_select %p85, %s86, %s87
      %p91 = pneg %p85
      %p92 = scmp.eq.s32.totalorder %s30, 3
      %p93 = por %p91, %p92
      %p94 = scmp.ne.s32.totalorder %s86, %s89
      %p95 = scmp.eq.s32.totalorder %s30, 0
      %p96 = por %p94, %p95
      %p97 = scmp.ne.s32.totalorder %s86, %s89
      %p98 = scmp.eq.s32.totalorder %s35, 3
      %p99 = por %p97, %p98
      %p100 = scmp.ne.s32.totalorder %s89, %s90
      %p101 = scmp.eq.s32.totalorder %s35, 0
      %p102 = por %p100, %p101
      %p103 = scmp.ne.s32.totalorder %s89, %s90
      %p104 = scmp.eq.s32.totalorder %s36, 3
      %p105 = por %p103, %p104
      %p107 = scmp.ne.s32.totalorder %s90, %s106
      %p108 = scmp.eq.s32.totalorder %s36, 0
      %p109 = por %p107, %p108
      %s110 = smul.u32 %s37, 2
      %s111 = sadd.s32 %s110, %s38
      %s112 = smul.u32 %s49, 2
      %s113 = sadd.s32 %s112, %s45
      %s114 = ssub.s32 %s111, %s113
      %p115 = scmp.eq.s32.totalorder %s114, 0
      %s117 = sadd.s32 %s116, 1
      %s118 = scalar_select %p115, %s116, %s117
      %p121 = pneg %p115
      %p122 = scmp.eq.s32.totalorder %s30, 3
      %p123 = por %p121, %p122
      %p124 = scmp.ne.s32.totalorder %s116, %s119
      %p125 = scmp.eq.s32.totalorder %s30, 0
      %p126 = por %p124, %p125
      %p127 = scmp.ne.s32.totalorder %s116, %s119
      %p128 = scmp.eq.s32.totalorder %s35, 3
      %p129 = por %p127, %p128
      %p130 = scmp.ne.s32.totalorder %s119, %s120
      %p131 = scmp.eq.s32.totalorder %s35, 0
      %p132 = por %p130, %p131
      %p133 = scmp.ne.s32.totalorder %s119, %s120
      %p134 = scmp.eq.s32.totalorder %s36, 3
      %p135 = por %p133, %p134
      %p137 = scmp.ne.s32.totalorder %s120, %s136
      %p138 = scmp.eq.s32.totalorder %s36, 0
      %p139 = por %p137, %p138
      %s140 = smul.u32 %s37, 2
      %s141 = sadd.s32 %s140, %s38
      %s142 = smul.u32 %s49, 2
      %s143 = sadd.s32 %s142, %s45
      %s144 = ssub.s32 %s141, %s143
      %p145 = scmp.eq.s32.totalorder %s144, 0
      %s147 = sadd.s32 %s146, 1
      %s148 = scalar_select %p145, %s146, %s147
      %p151 = pneg %p145
      %p152 = scmp.eq.s32.totalorder %s30, 3
      %p153 = por %p151, %p152
      %p154 = scmp.ne.s32.totalorder %s146, %s149
      %p155 = scmp.eq.s32.totalorder %s30, 0
      %p156 = por %p154, %p155
      %p157 = scmp.ne.s32.totalorder %s146, %s149
      %p158 = scmp.eq.s32.totalorder %s35, 3
      %p159 = por %p157, %p158
      %p160 = scmp.ne.s32.totalorder %s149, %s150
      %p161 = scmp.eq.s32.totalorder %s35, 0
      %p162 = por %p160, %p161
      %p163 = scmp.ne.s32.totalorder %s149, %s150
      %p164 = scmp.eq.s32.totalorder %s36, 3
      %p165 = por %p163, %p164
      %p167 = scmp.ne.s32.totalorder %s150, %s166
      %p168 = scmp.eq.s32.totalorder %s36, 0
      %p169 = por %p167, %p168
      %s170 = smul.u32 %s37, 2
      %s171 = sadd.s32 %s170, %s38
      %s172 = smul.u32 %s49, 2
      %s173 = sadd.s32 %s172, %s45
      %s174 = ssub.s32 %s171, %s173
      %p175 = scmp.eq.s32.totalorder %s174, 0
      %s177 = sadd.s32 %s176, 1
      %s178 = scalar_select %p175, %s176, %s177
      %p181 = pneg %p175
      %p182 = scmp.eq.s32.totalorder %s30, 3
      %p183 = por %p181, %p182
      %p184 = scmp.ne.s32.totalorder %s176, %s179
      %p185 = scmp.eq.s32.totalorder %s30, 0
      %p186 = por %p184, %p185
      %p187 = scmp.ne.s32.totalorder %s176, %s179
      %p188 = scmp.eq.s32.totalorder %s35, 3
      %p189 = por %p187, %p188
      %p190 = scmp.ne.s32.totalorder %s179, %s180
      %p191 = scmp.eq.s32.totalorder %s35, 0
      %p192 = por %p190, %p191
      %p193 = scmp.ne.s32.totalorder %s179, %s180
      %p194 = scmp.eq.s32.totalorder %s36, 3
      %p195 = por %p193, %p194
      %p197 = scmp.ne.s32.totalorder %s180, %s196
      %p198 = scmp.eq.s32.totalorder %s36, 0
      %p199 = por %p197, %p198
      %s200 = smul.u32 %s37, 2
      %s201 = sadd.s32 %s200, %s38
      %s202 = smul.u32 %s49, 2
      %s203 = sadd.s32 %s202, %s45
      %s204 = ssub.s32 %s201, %s203
      %p205 = scmp.eq.s32.totalorder %s204, 0
      %s207 = sadd.s32 %s206, 1
      %s208 = scalar_select %p205, %s206, %s207
      %p211 = pneg %p205
      %p212 = scmp.eq.s32.totalorder %s30, 3
      %p213 = por %p211, %p212
      %p214 = scmp.ne.s32.totalorder %s206, %s209
      %p215 = scmp.eq.s32.totalorder %s30, 0
      %p216 = por %p214, %p215
      %p217 = scmp.ne.s32.totalorder %s206, %s209
      %p218 = scmp.eq.s32.totalorder %s35, 3
      %p219 = por %p217, %p218
      %p220 = scmp.ne.s32.totalorder %s209, %s210
      %p221 = scmp.eq.s32.totalorder %s35, 0
      %p222 = por %p220, %p221
      %p223 = scmp.ne.s32.totalorder %s209, %s210
      %p224 = scmp.eq.s32.totalorder %s36, 3
      %p225 = por %p223, %p224
      %p227 = scmp.ne.s32.totalorder %s210, %s226
      %p228 = scmp.eq.s32.totalorder %s36, 0
      %p229 = por %p227, %p228
      %s230 = smul.u32 %s37, 2
      %s231 = sadd.s32 %s230, %s38
      %s232 = smul.u32 %s49, 2
      %s233 = sadd.s32 %s232, %s45
      %s234 = ssub.s32 %s231, %s233
      %p235 = scmp.eq.s32.totalorder %s234, 0
      %s237 = sadd.s32 %s236, 1
      %s238 = scalar_select %p235, %s236, %s237
      %p241 = pneg %p235
      %p242 = scmp.eq.s32.totalorder %s30, 3
      %p243 = por %p241, %p242
      %p244 = scmp.ne.s32.totalorder %s236, %s239
      %p245 = scmp.eq.s32.totalorder %s30, 0
      %p246 = por %p244, %p245
      %p247 = scmp.ne.s32.totalorder %s236, %s239
      %p248 = scmp.eq.s32.totalorder %s35, 3
      %p249 = por %p247, %p248
      %p250 = scmp.ne.s32.totalorder %s239, %s240
      %p251 = scmp.eq.s32.totalorder %s35, 0
      %p252 = por %p250, %p251
      %p253 = scmp.ne.s32.totalorder %s239, %s240
      %p254 = scmp.eq.s32.totalorder %s36, 3
      %p255 = por %p253, %p254
      %p257 = scmp.ne.s32.totalorder %s240, %s256
      %p258 = scmp.eq.s32.totalorder %s36, 0
      %p259 = por %p257, %p258
      %s260 = smul.u32 %s37, 2
      %s261 = sadd.s32 %s260, %s38
      %s262 = smul.u32 %s49, 2
      %s263 = sadd.s32 %s262, %s45
      %s264 = ssub.s32 %s261, %s263
      %p265 = scmp.eq.s32.totalorder %s264, 0
      %s267 = sadd.s32 %s266, 1
      %s268 = scalar_select %p265, %s266, %s267
      %p271 = pneg %p265
      %p272 = scmp.eq.s32.totalorder %s30, 3
      %p273 = por %p271, %p272
      %p274 = scmp.ne.s32.totalorder %s266, %s269
      %p275 = scmp.eq.s32.totalorder %s30, 0
      %p276 = por %p274, %p275
      %p277 = scmp.ne.s32.totalorder %s266, %s269
      %p278 = scmp.eq.s32.totalorder %s35, 3
      %p279 = por %p277, %p278
      %p280 = scmp.ne.s32.totalorder %s269, %s270
      %p281 = scmp.eq.s32.totalorder %s35, 0
      %p282 = por %p280, %p281
      %p283 = scmp.ne.s32.totalorder %s269, %s270
      %p284 = scmp.eq.s32.totalorder %s36, 3
      %p285 = por %p283, %p284
      %p287 = scmp.ne.s32.totalorder %s270, %s286
      %p288 = scmp.eq.s32.totalorder %s36, 0
      %p289 = por %p287, %p288
      %s290 = smul.u32 %s37, 2
      %s291 = sadd.s32 %s290, %s38
      %s292 = smul.u32 %s49, 2
      %s293 = sadd.s32 %s292, %s45
      %s294 = ssub.s32 %s291, %s293
      %p295 = scmp.eq.s32.totalorder %s294, 0
      %s297 = sadd.s32 %s296, 1
      %s298 = scalar_select %p295, %s296, %s297
      %p301 = pneg %p295
      %p302 = scmp.eq.s32.totalorder %s30, 3
      %p303 = por %p301, %p302
      %p304 = scmp.ne.s32.totalorder %s296, %s299
      %p305 = scmp.eq.s32.totalorder %s30, 0
      %p306 = por %p304, %p305
      %p307 = scmp.ne.s32.totalorder %s296, %s299
      %p308 = scmp.eq.s32.totalorder %s35, 3
      %p309 = por %p307, %p308
      %p310 = scmp.ne.s32.totalorder %s299, %s300
      %p311 = scmp.eq.s32.totalorder %s35, 0
      %p312 = por %p310, %p311
      %p313 = scmp.ne.s32.totalorder %s299, %s300
      %p314 = scmp.eq.s32.totalorder %s36, 3
      %p315 = por %p313, %p314
      %p317 = scmp.ne.s32.totalorder %s300, %s316
      %p318 = scmp.eq.s32.totalorder %s36, 0
      %p319 = por %p317, %p318
      %s320 = smul.u32 %s37, 2
      %s321 = sadd.s32 %s320, %s38
      %s322 = smul.u32 %s49, 2
      %s323 = sadd.s32 %s322, %s45
      %s324 = ssub.s32 %s321, %s323
      %p325 = scmp.eq.s32.totalorder %s324, 0
      %s327 = sadd.s32 %s326, 1
      %s328 = scalar_select %p325, %s326, %s327
      %p331 = pneg %p325
      %p332 = scmp.eq.s32.totalorder %s30, 3
      %p333 = por %p331, %p332
      %p334 = scmp.ne.s32.totalorder %s326, %s329
      %p335 = scmp.eq.s32.totalorder %s30, 0
      %p336 = por %p334, %p335
      %p337 = scmp.ne.s32.totalorder %s326, %s329
      %p338 = scmp.eq.s32.totalorder %s35, 3
      %p339 = por %p337, %p338
      %p340 = scmp.ne.s32.totalorder %s329, %s330
      %p341 = scmp.eq.s32.totalorder %s35, 0
      %p342 = por %p340, %p341
      %p343 = scmp.ne.s32.totalorder %s329, %s330
      %p344 = scmp.eq.s32.totalorder %s36, 3
      %p345 = por %p343, %p344
      %p347 = scmp.ne.s32.totalorder %s330, %s346
      %p348 = scmp.eq.s32.totalorder %s36, 0
      %p349 = por %p347, %p348
      %s350 = smul.u32 %s37, 2
      %s351 = sadd.s32 %s350, %s38
      %s352 = smul.u32 %s49, 2
      %s353 = sadd.s32 %s352, %s45
      %s354 = ssub.s32 %s351, %s353
      %p355 = scmp.eq.s32.totalorder %s354, 0
      %s357 = sadd.s32 %s356, 1
      %s358 = scalar_select %p355, %s356, %s357
      %p361 = pneg %p355
      %p362 = scmp.eq.s32.totalorder %s30, 3
      %p363 = por %p361, %p362
      %p364 = scmp.ne.s32.totalorder %s356, %s359
      %p365 = scmp.eq.s32.totalorder %s30, 0
      %p366 = por %p364, %p365
      %p367 = scmp.ne.s32.totalorder %s356, %s359
      %p368 = scmp.eq.s32.totalorder %s35, 3
      %p369 = por %p367, %p368
      %p370 = scmp.ne.s32.totalorder %s359, %s360
      %p371 = scmp.eq.s32.totalorder %s35, 0
      %p372 = por %p370, %p371
      %p373 = scmp.ne.s32.totalorder %s359, %s360
      %p374 = scmp.eq.s32.totalorder %s36, 3
      %p375 = por %p373, %p374
      %p377 = scmp.ne.s32.totalorder %s360, %s376
      %p378 = scmp.eq.s32.totalorder %s36, 0
      %p379 = por %p377, %p378
      %s380 = smul.u32 %s37, 2
      %s381 = sadd.s32 %s380, %s38
      %s382 = smul.u32 %s49, 2
      %s383 = sadd.s32 %s382, %s45
      %s384 = ssub.s32 %s381, %s383
      %p385 = scmp.eq.s32.totalorder %s384, 0
      %s387 = sadd.s32 %s386, 1
      %s388 = scalar_select %p385, %s386, %s387
      %p391 = pneg %p385
      %p392 = scmp.eq.s32.totalorder %s30, 3
      %p393 = por %p391, %p392
      %p394 = scmp.ne.s32.totalorder %s386, %s389
      %p395 = scmp.eq.s32.totalorder %s30, 0
      %p396 = por %p394, %p395
      %p397 = scmp.ne.s32.totalorder %s386, %s389
      %p398 = scmp.eq.s32.totalorder %s35, 3
      %p399 = por %p397, %p398
      %p400 = scmp.ne.s32.totalorder %s389, %s390
      %p401 = scmp.eq.s32.totalorder %s35, 0
      %p402 = por %p400, %p401
      %p403 = scmp.ne.s32.totalorder %s389, %s390
      %p404 = scmp.eq.s32.totalorder %s36, 3
      %p405 = por %p403, %p404
      %p407 = scmp.ne.s32.totalorder %s390, %s406
      %p408 = scmp.eq.s32.totalorder %s36, 0
      %p409 = por %p407, %p408
      %s410 = ssub.s32 %s37, %s49
      %p411 = scmp.eq.s32.totalorder %s410, 0
      %s413 = sadd.s32 %s412, 1
      %s414 = scalar_select %p411, %s412, %s413
      %p417 = pneg %p411
      %p418 = scmp.eq.s32.totalorder %s30, 3
      %p419 = por %p417, %p418
      %p420 = scmp.ne.s32.totalorder %s412, %s415
      %p421 = scmp.eq.s32.totalorder %s30, 0
      %p422 = por %p420, %p421
      %p423 = scmp.ne.s32.totalorder %s412, %s415
      %p424 = scmp.eq.s32.totalorder %s35, 3
      %p425 = por %p423, %p424
      %p426 = scmp.ne.s32.totalorder %s415, %s416
      %p427 = scmp.eq.s32.totalorder %s35, 0
      %p428 = por %p426, %p427
      %p429 = scmp.ne.s32.totalorder %s415, %s416
      %p430 = scmp.eq.s32.totalorder %s36, 3
      %p431 = por %p429, %p430
      %p433 = scmp.ne.s32.totalorder %s416, %s432
      %p434 = scmp.eq.s32.totalorder %s36, 0
      %p435 = por %p433, %p434
      %p436 = scmp.le.s32.totalorder 1, %s30
      %p437 = scmp.lt.s32.totalorder %s30, 5
      %p438 = pnand %p436, %p437
      %p439 = pneg %p438
      // Predicated region
      $region9: #{tpu_custom_call.1} parent=5 // pred_check
        _
      $region10: #{tpu_custom_call.1} parent=5 // pred_check_branch
        %441 = sbr.rel (%p438) target = $region12
      $region11: #{tpu_custom_call.1} parent=5 // pred_region
        %s442 = ssub.s32 %s30, 1
      $region12: #{tpu_custom_call.1} parent=5 // pred_fallthru
        _
      %p443 = scmp.lt.s32.totalorder %s30, 4
      // Predicated region
      $region13: #{tpu_custom_call.1} parent=5 // pred_check
        %p444 = pneg %p443
      $region14: #{tpu_custom_call.1} parent=5 // pred_check_branch
        %446 = sbr.rel (%p444) target = $region16
      $region15: #{tpu_custom_call.1} parent=5 // pred_region
        // Predicated region
        $region17: #{tpu_custom_call.1} parent=15 // pred_check
          %p447 = pneg %p66
        $region18: #{tpu_custom_call.1} parent=15 // pred_check_branch
          %449 = sbr.rel (%p447) target = $region20
        $region19: #{tpu_custom_call.1} parent=15 // pred_region
          %s450 = smul.u32 %s37, 2
          %s451 = sadd.s32 %s450, %s38
          %p452 = scmp.lt.s32.totalorder %s451, 3
          %s453 = scalar_select %p452, %s451, 3
          %s454 = smul.addr %s453, 2
          %s455 = smul.addr %s454, 8
          %s456 = scalar_lea.vmem %s0, %s455
          %s457 = smul.u32 %s37, 2
          %s458 = sadd.s32 %s457, %s38
        $region20: #{tpu_custom_call.1} parent=15 // pred_fallthru
          _
        // Predicated region
        $region21: #{tpu_custom_call.1} parent=15 // pred_check
          %p459 = pneg %p96
        $region22: #{tpu_custom_call.1} parent=15 // pred_check_branch
          %461 = sbr.rel (%p459) target = $region24
        $region23: #{tpu_custom_call.1} parent=15 // pred_region
          %s462 = smul.u32 %s37, 2
          %s463 = sadd.s32 %s462, %s38
          %p464 = scmp.lt.s32.totalorder %s463, 3
          %s465 = scalar_select %p464, %s463, 3
          %s466 = smul.addr %s465, 2
          %s467 = smul.addr %s466, 8
          %s468 = scalar_lea.vmem %s1, %s467
          %s469 = smul.u32 %s37, 2
          %s470 = sadd.s32 %s469, %s38
        $region24: #{tpu_custom_call.1} parent=15 // pred_fallthru
          _
        // Predicated region
        $region25: #{tpu_custom_call.1} parent=15 // pred_check
          %p471 = pneg %p126
        $region26: #{tpu_custom_call.1} parent=15 // pred_check_branch
          %473 = sbr.rel (%p471) target = $region28
        $region27: #{tpu_custom_call.1} parent=15 // pred_region
          %s474 = sand.u32 %s116, 1
          %s475 = scalar_lea.sflag [#allocation4], %s474
          %s476 = sand.u32 %s116, 1
          %s477 = smul.addr %s476, 16
          %s478 = scalar_lea.vmem [#allocation3], %s477
          %s479 = smul.u32 %s37, 2
          %s480 = sadd.s32 %s479, %s38
          %482 = vsyncadd %s475, 0
          %s483 = smul.addr %s480, 2
          %s484 = smul.addr %s483, 8
          %s485 = scalar_lea.hbm %s2, %s484
          %s487 = sshll.u32 %s485, 4
          %s488 = int_to_ptr.hbm [resolvable:$true] %s487
          %s489 = sshll.u32 %s478, 4
          %s490 = int_to_ptr.vmem [resolvable:$true] %s489
          %492 = dma.hbm_to_vmem [thread:$0]  %s488, 256, %s490, %s475
        $region28: #{tpu_custom_call.1} parent=15 // pred_fallthru
          _
        // Predicated region
        $region29: #{tpu_custom_call.1} parent=15 // pred_check
          %p493 = pneg %p156
        $region30: #{tpu_custom_call.1} parent=15 // pred_check_branch
          %495 = sbr.rel (%p493) target = $region32
        $region31: #{tpu_custom_call.1} parent=15 // pred_region
          %s496 = sand.u32 %s30, 1
          %s497 = scalar_lea.sflag [#allocation6], %s496
          %s498 = sand.u32 %s146, 1
          %s499 = smul.addr %s498, 24
          %s500 = scalar_lea.vmem [#allocation5], %s499
          %s501 = smul.u32 %s37, 2
          %s502 = sadd.s32 %s501, %s38
          %504 = vsyncadd %s497, 0
          %s505 = smul.addr %s502, 3
          %s506 = smul.addr %s505, 8
          %s507 = scalar_lea.hbm %s3, %s506
          %s509 = sshll.u32 %s507, 4
          %s510 = int_to_ptr.hbm [resolvable:$true] %s509
          %s511 = sshll.u32 %s500, 4
          %s512 = int_to_ptr.vmem [resolvable:$true] %s511
          %514 = dma.hbm_to_vmem [thread:$0]  %s510, 384, %s512, %s497
        $region32: #{tpu_custom_call.1} parent=15 // pred_fallthru
          _
        // Predicated region
        $region33: #{tpu_custom_call.1} parent=15 // pred_check
          %p515 = pneg %p186
        $region34: #{tpu_custom_call.1} parent=15 // pred_check_branch
          %517 = sbr.rel (%p515) target = $region36
        $region35: #{tpu_custom_call.1} parent=15 // pred_region
          %s518 = sand.u32 %s30, 1
          %s519 = scalar_lea.sflag [#allocation6], %s518
          %s520 = sand.u32 %s176, 1
          %s521 = smul.addr %s520, 24
          %s522 = scalar_lea.vmem [#allocation7], %s521
          %s523 = smul.u32 %s37, 2
          %s524 = sadd.s32 %s523, %s38
          %526 = vsyncadd %s519, 0
          %s527 = smul.addr %s524, 3
          %s528 = smul.addr %s527, 8
          %s529 = scalar_lea.hbm %s4, %s528
          %s531 = sshll.u32 %s529, 4
          %s532 = int_to_ptr.hbm [resolvable:$true] %s531
          %s533 = sshll.u32 %s522, 4
          %s534 = int_to_ptr.vmem [resolvable:$true] %s533
          %536 = dma.hbm_to_vmem [thread:$0]  %s532, 384, %s534, %s519
        $region36: #{tpu_custom_call.1} parent=15 // pred_fallthru
          _
        // Predicated region
        $region37: #{tpu_custom_call.1} parent=15 // pred_check
          %p537 = pneg %p216
        $region38: #{tpu_custom_call.1} parent=15 // pred_check_branch
          %539 = sbr.rel (%p537) target = $region40
        $region39: #{tpu_custom_call.1} parent=15 // pred_region
          %s540 = smul.u32 %s37, 2
          %s541 = sadd.s32 %s540, %s38
          %p542 = scmp.lt.s32.totalorder %s541, 3
          %s543 = scalar_select %p542, %s541, 3
          %s544 = smul.addr %s543, 8
          %s545 = scalar_lea.vmem %s5, %s544
          %s546 = smul.u32 %s37, 2
          %s547 = sadd.s32 %s546, %s38
        $region40: #{tpu_custom_call.1} parent=15 // pred_fallthru
          _
        // Predicated region
        $region41: #{tpu_custom_call.1} parent=15 // pred_check
          %p548 = pneg %p246
        $region42: #{tpu_custom_call.1} parent=15 // pred_check_branch
          %550 = sbr.rel (%p548) target = $region44
        $region43: #{tpu_custom_call.1} parent=15 // pred_region
          %s551 = smul.u32 %s37, 2
          %s552 = sadd.s32 %s551, %s38
          %p553 = scmp.lt.s32.totalorder %s552, 3
          %s554 = scalar_select %p553, %s552, 3
          %s555 = smul.addr %s554, 8
          %s556 = scalar_lea.vmem %s6, %s555
          %s557 = smul.u32 %s37, 2
          %s558 = sadd.s32 %s557, %s38
        $region44: #{tpu_custom_call.1} parent=15 // pred_fallthru
          _
        // Predicated region
        $region45: #{tpu_custom_call.1} parent=15 // pred_check
          %p559 = pneg %p276
        $region46: #{tpu_custom_call.1} parent=15 // pred_check_branch
          %561 = sbr.rel (%p559) target = $region48
        $region47: #{tpu_custom_call.1} parent=15 // pred_region
          %s562 = smul.u32 %s37, 2
          %s563 = sadd.s32 %s562, %s38
          %p564 = scmp.lt.s32.totalorder %s563, 3
          %s565 = scalar_select %p564, %s563, 3
          %s566 = smul.addr %s565, 8
          %s567 = scalar_lea.vmem %s7, %s566
          %s568 = smul.u32 %s37, 2
          %s569 = sadd.s32 %s568, %s38
        $region48: #{tpu_custom_call.1} parent=15 // pred_fallthru
          _
        // Predicated region
        $region49: #{tpu_custom_call.1} parent=15 // pred_check
          %p570 = pneg %p306
        $region50: #{tpu_custom_call.1} parent=15 // pred_check_branch
          %572 = sbr.rel (%p570) target = $region52
        $region51: #{tpu_custom_call.1} parent=15 // pred_region
          %s573 = smul.u32 %s37, 2
          %s574 = sadd.s32 %s573, %s38
          %p575 = scmp.lt.s32.totalorder %s574, 3
          %s576 = scalar_select %p575, %s574, 3
          %s577 = smul.addr %s576, 8
          %s578 = scalar_lea.vmem %s8, %s577
          %s579 = smul.u32 %s37, 2
          %s580 = sadd.s32 %s579, %s38
        $region52: #{tpu_custom_call.1} parent=15 // pred_fallthru
          _
        // Predicated region
        $region53: #{tpu_custom_call.1} parent=15 // pred_check
          %p581 = pneg %p336
        $region54: #{tpu_custom_call.1} parent=15 // pred_check_branch
          %583 = sbr.rel (%p581) target = $region56
        $region55: #{tpu_custom_call.1} parent=15 // pred_region
          %s584 = sand.u32 %s30, 1
          %s585 = scalar_lea.sflag [#allocation9], %s584
          %s586 = sand.u32 %s326, 1
          %s587 = smul.addr %s586, 8
          %s588 = scalar_lea.vmem [#allocation8], %s587
          %s589 = smul.u32 %s37, 2
          %s590 = sadd.s32 %s589, %s38
          %592 = vsyncadd %s585, 0
          %s593 = smul.addr %s590, 8
          %s594 = scalar_lea.hbm %s9, %s593
          %s596 = sshll.u32 %s594, 4
          %s597 = int_to_ptr.hbm [resolvable:$true] %s596
          %s598 = sshll.u32 %s588, 4
          %s599 = int_to_ptr.vmem [resolvable:$true] %s598
          %601 = dma.hbm_to_vmem [thread:$0]  %s597, 128, %s599, %s585
        $region56: #{tpu_custom_call.1} parent=15 // pred_fallthru
          _
        // Predicated region
        $region57: #{tpu_custom_call.1} parent=15 // pred_check
          %p602 = pneg %p366
        $region58: #{tpu_custom_call.1} parent=15 // pred_check_branch
          %604 = sbr.rel (%p602) target = $region60
        $region59: #{tpu_custom_call.1} parent=15 // pred_region
          %s605 = sand.u32 %s30, 1
          %s606 = scalar_lea.sflag [#allocation9], %s605
          %s607 = sand.u32 %s356, 1
          %s608 = smul.addr %s607, 8
          %s609 = scalar_lea.vmem [#allocation10], %s608
          %s610 = smul.u32 %s37, 2
          %s611 = sadd.s32 %s610, %s38
          %613 = vsyncadd %s606, 0
          %s614 = smul.addr %s611, 8
          %s615 = scalar_lea.hbm %s10, %s614
          %s617 = sshll.u32 %s615, 4
          %s618 = int_to_ptr.hbm [resolvable:$true] %s617
          %s619 = sshll.u32 %s609, 4
          %s620 = int_to_ptr.vmem [resolvable:$true] %s619
          %622 = dma.hbm_to_vmem [thread:$0]  %s618, 128, %s620, %s606
        $region60: #{tpu_custom_call.1} parent=15 // pred_fallthru
          _
        // Predicated region
        $region61: #{tpu_custom_call.1} parent=15 // pred_check
          %p623 = pneg %p396
        $region62: #{tpu_custom_call.1} parent=15 // pred_check_branch
          %625 = sbr.rel (%p623) target = $region64
        $region63: #{tpu_custom_call.1} parent=15 // pred_region
          %s626 = sand.u32 %s386, 1
          %s627 = scalar_lea.sflag [#allocation12], %s626
          %s628 = sand.u32 %s386, 1
          %s629 = smul.addr %s628, 16
          %s630 = scalar_lea.vmem [#allocation11], %s629
          %s631 = smul.u32 %s37, 2
          %s632 = sadd.s32 %s631, %s38
          %634 = vsyncadd %s627, 0
          %s635 = smul.addr %s632, 8
          %s636 = scalar_lea.hbm %s11, %s635
          %s637 = sshll.u32 %s636, 4
          %s638 = int_to_ptr.hbm [resolvable:$true] %s637
          %s639 = sshll.u32 %s630, 4
          %s640 = int_to_ptr.vmem [resolvable:$true] %s639
          %645 = dma.hbm_to_vmem [thread:$0]  %s638, 256, %s640, %s627, 512, 128, 8
        $region64: #{tpu_custom_call.1} parent=15 // pred_fallthru
          _
      $region16: #{tpu_custom_call.1} parent=5 // pred_fallthru
        _
      %p646 = scmp.le.s32.totalorder 1, %s30
      %p647 = scmp.lt.s32.totalorder %s30, 5
      %p648 = pnand %p646, %p647
      %p649 = pneg %p648
      // Predicated region
      $region65: #{tpu_custom_call.1} parent=5 // pred_check
        _
      $region66: #{tpu_custom_call.1} parent=5 // pred_check_branch
        %651 = sbr.rel (%p648) target = $region68
      $region67: #{tpu_custom_call.1} parent=5 // pred_region
        %s652 = ssub.s32 %s30, 1
        %s653 = sand.u32 %s119, 1
        %s654 = scalar_lea.sflag [#allocation4], %s653
        %s655 = sand.u32 %s119, 1
        %s656 = smul.addr %s655, 16
        %s657 = scalar_lea.vmem [#allocation3], %s656
        // Predicated region
        $region69: #{tpu_custom_call.1} parent=67 // pred_check
          %p658 = pneg %p132
        $region70: #{tpu_custom_call.1} parent=67 // pred_check_branch
          %660 = sbr.rel (%p658) target = $region72
        $region71: #{tpu_custom_call.1} parent=67 // pred_region
          %662 = dma.done %s654, 256
        $region72: #{tpu_custom_call.1} parent=67 // pred_fallthru
          _
        %s663 = sand.u32 %s35, 1
        %s664 = scalar_lea.sflag [#allocation6], %s663
        %s665 = sand.u32 %s149, 1
        %s666 = smul.addr %s665, 24
        %s667 = scalar_lea.vmem [#allocation5], %s666
        // Predicated region
        $region73: #{tpu_custom_call.1} parent=67 // pred_check
          %p668 = pneg %p162
        $region74: #{tpu_custom_call.1} parent=67 // pred_check_branch
          %670 = sbr.rel (%p668) target = $region76
        $region75: #{tpu_custom_call.1} parent=67 // pred_region
          %672 = dma.done %s664, 384
        $region76: #{tpu_custom_call.1} parent=67 // pred_fallthru
          _
        %s673 = sand.u32 %s35, 1
        %s674 = scalar_lea.sflag [#allocation6], %s673
        %s675 = sand.u32 %s179, 1
        %s676 = smul.addr %s675, 24
        %s677 = scalar_lea.vmem [#allocation7], %s676
        // Predicated region
        $region77: #{tpu_custom_call.1} parent=67 // pred_check
          %p678 = pneg %p192
        $region78: #{tpu_custom_call.1} parent=67 // pred_check_branch
          %680 = sbr.rel (%p678) target = $region80
        $region79: #{tpu_custom_call.1} parent=67 // pred_region
          %682 = dma.done %s674, 384
        $region80: #{tpu_custom_call.1} parent=67 // pred_fallthru
          _
        %s683 = sand.u32 %s35, 1
        %s684 = scalar_lea.sflag [#allocation9], %s683
        %s685 = sand.u32 %s329, 1
        %s686 = smul.addr %s685, 8
        %s687 = scalar_lea.vmem [#allocation8], %s686
        // Predicated region
        $region81: #{tpu_custom_call.1} parent=67 // pred_check
          %p688 = pneg %p342
        $region82: #{tpu_custom_call.1} parent=67 // pred_check_branch
          %690 = sbr.rel (%p688) target = $region84
        $region83: #{tpu_custom_call.1} parent=67 // pred_region
          %692 = dma.done %s684, 128
        $region84: #{tpu_custom_call.1} parent=67 // pred_fallthru
          _
        %s693 = sand.u32 %s35, 1
        %s694 = scalar_lea.sflag [#allocation9], %s693
        %s695 = sand.u32 %s359, 1
        %s696 = smul.addr %s695, 8
        %s697 = scalar_lea.vmem [#allocation10], %s696
        // Predicated region
        $region85: #{tpu_custom_call.1} parent=67 // pred_check
          %p698 = pneg %p372
        $region86: #{tpu_custom_call.1} parent=67 // pred_check_branch
          %700 = sbr.rel (%p698) target = $region88
        $region87: #{tpu_custom_call.1} parent=67 // pred_region
          %702 = dma.done %s694, 128
        $region88: #{tpu_custom_call.1} parent=67 // pred_fallthru
          _
        %s703 = sand.u32 %s389, 1
        %s704 = scalar_lea.sflag [#allocation12], %s703
        %s705 = sand.u32 %s389, 1
        %s706 = smul.addr %s705, 16
        %s707 = scalar_lea.vmem [#allocation11], %s706
        // Predicated region
        $region89: #{tpu_custom_call.1} parent=67 // pred_check
          %p708 = pneg %p402
        $region90: #{tpu_custom_call.1} parent=67 // pred_check_branch
          %710 = sbr.rel (%p708) target = $region92
        $region91: #{tpu_custom_call.1} parent=67 // pred_region
          %712 = dma.done %s704, 256
        $region92: #{tpu_custom_call.1} parent=67 // pred_fallthru
          _
        %s713 = smul.u32 %s39, 2
        %s714 = sadd.s32 %s713, %s40
        %p715 = scmp.lt.s32.totalorder %s714, 3
        %s716 = scalar_select %p715, %s714, 3
        %s717 = smul.addr %s716, 2
        %s718 = smul.addr %s717, 8
        %s719 = scalar_lea.vmem %s0, %s718
        %p720 = pneg %p72
        %p721 = pneg %p69
        %s722 = smul.u32 %s39, 2
        %s723 = sadd.s32 %s722, %s40
        %p724 = scmp.lt.s32.totalorder %s723, 3
        %s725 = scalar_select %p724, %s723, 3
        %s726 = smul.addr %s725, 2
        %s727 = smul.addr %s726, 8
        %s728 = scalar_lea.vmem %s1, %s727
        %p729 = pneg %p102
        %p730 = pneg %p99
        %s731 = sand.u32 %s119, 1
        %s732 = scalar_lea.sflag [#allocation4], %s731
        %s733 = sand.u32 %s119, 1
        %s734 = smul.addr %s733, 16
        %s735 = scalar_lea.vmem [#allocation3], %s734
        %p736 = pneg %p132
        %p737 = pneg %p129
        %s738 = sand.u32 %s35, 1
        %s739 = scalar_lea.sflag [#allocation6], %s738
        %s740 = sand.u32 %s149, 1
        %s741 = smul.addr %s740, 24
        %s742 = scalar_lea.vmem [#allocation5], %s741
        %p743 = pneg %p162
        %p744 = pneg %p159
        %s745 = sand.u32 %s35, 1
        %s746 = scalar_lea.sflag [#allocation6], %s745
        %s747 = sand.u32 %s179, 1
        %s748 = smul.addr %s747, 24
        %s749 = scalar_lea.vmem [#allocation7], %s748
        %p750 = pneg %p192
        %p751 = pneg %p189
        %s752 = smul.u32 %s39, 2
        %s753 = sadd.s32 %s752, %s40
        %p754 = scmp.lt.s32.totalorder %s753, 3
        %s755 = scalar_select %p754, %s753, 3
        %s756 = smul.addr %s755, 8
        %s757 = scalar_lea.vmem %s5, %s756
        %p758 = pneg %p222
        %p759 = pneg %p219
        %s760 = smul.u32 %s39, 2
        %s761 = sadd.s32 %s760, %s40
        %p762 = scmp.lt.s32.totalorder %s761, 3
        %s763 = scalar_select %p762, %s761, 3
        %s764 = smul.addr %s763, 8
        %s765 = scalar_lea.vmem %s6, %s764
        %p766 = pneg %p252
        %p767 = pneg %p249
        %s768 = smul.u32 %s39, 2
        %s769 = sadd.s32 %s768, %s40
        %p770 = scmp.lt.s32.totalorder %s769, 3
        %s771 = scalar_select %p770, %s769, 3
        %s772 = smul.addr %s771, 8
        %s773 = scalar_lea.vmem %s7, %s772
        %p774 = pneg %p282
        %p775 = pneg %p279
        %s776 = smul.u32 %s39, 2
        %s777 = sadd.s32 %s776, %s40
        %p778 = scmp.lt.s32.totalorder %s777, 3
        %s779 = scalar_select %p778, %s777, 3
        %s780 = smul.addr %s779, 8
        %s781 = scalar_lea.vmem %s8, %s780
        %p782 = pneg %p312
        %p783 = pneg %p309
        %s784 = sand.u32 %s35, 1
        %s785 = scalar_lea.sflag [#allocation9], %s784
        %s786 = sand.u32 %s329, 1
        %s787 = smul.addr %s786, 8
        %s788 = scalar_lea.vmem [#allocation8], %s787
        %p789 = pneg %p342
        %p790 = pneg %p339
        %s791 = sand.u32 %s35, 1
        %s792 = scalar_lea.sflag [#allocation9], %s791
        %s793 = sand.u32 %s359, 1
        %s794 = smul.addr %s793, 8
        %s795 = scalar_lea.vmem [#allocation10], %s794
        %p796 = pneg %p372
        %p797 = pneg %p369
        %s798 = sand.u32 %s389, 1
        %s799 = scalar_lea.sflag [#allocation12], %s798
        %s800 = sand.u32 %s389, 1
        %s801 = smul.addr %s800, 16
        %s802 = scalar_lea.vmem [#allocation11], %s801
        %p803 = pneg %p402
        %p804 = pneg %p399
        %p805 = pneg %p428
        %p806 = pneg %p425
        %p807 = scmp.lt.s32.totalorder %s39, 1
        %s808 = scalar_select %p807, %s39, 1
        %s809 = scalar_lea.vmem %s12, %s808
        %s810 = smul.u32 %s39, 2
        %s811 = sadd.s32 %s810, %s40
        %p812 = scmp.lt.s32.totalorder %s811, 3
        %s813 = scalar_select %p812, %s811, 3
        %s814 = smul.addr %s813, 2
        %s815 = smul.addr %s814, 8
        %s816 = scalar_lea.vmem %s0, %s815
        %s817 = smul.u32 %s39, 2
        %s818 = sadd.s32 %s817, %s40
        %s819 = smul.u32 %s39, 2
        %s820 = sadd.s32 %s819, %s40
        %p821 = scmp.lt.s32.totalorder %s820, 3
        %s822 = scalar_select %p821, %s820, 3
        %s823 = smul.addr %s822, 2
        %s824 = smul.addr %s823, 8
        %s825 = scalar_lea.vmem %s1, %s824
        %s826 = smul.u32 %s39, 2
        %s827 = sadd.s32 %s826, %s40
        %s828 = smul.u32 %s39, 2
        %s829 = sadd.s32 %s828, %s40
        %s830 = smul.u32 %s39, 2
        %s831 = sadd.s32 %s830, %s40
        %s832 = smul.u32 %s39, 2
        %s833 = sadd.s32 %s832, %s40
        %s834 = smul.u32 %s39, 2
        %s835 = sadd.s32 %s834, %s40
        %p836 = scmp.lt.s32.totalorder %s835, 3
        %s837 = scalar_select %p836, %s835, 3
        %s838 = smul.addr %s837, 8
        %s839 = scalar_lea.vmem %s5, %s838
        %s840 = smul.u32 %s39, 2
        %s841 = sadd.s32 %s840, %s40
        %s842 = smul.u32 %s39, 2
        %s843 = sadd.s32 %s842, %s40
        %p844 = scmp.lt.s32.totalorder %s843, 3
        %s845 = scalar_select %p844, %s843, 3
        %s846 = smul.addr %s845, 8
        %s847 = scalar_lea.vmem %s6, %s846
        %s848 = smul.u32 %s39, 2
        %s849 = sadd.s32 %s848, %s40
        %s850 = smul.u32 %s39, 2
        %s851 = sadd.s32 %s850, %s40
        %p852 = scmp.lt.s32.totalorder %s851, 3
        %s853 = scalar_select %p852, %s851, 3
        %s854 = smul.addr %s853, 8
        %s855 = scalar_lea.vmem %s7, %s854
        %s856 = smul.u32 %s39, 2
        %s857 = sadd.s32 %s856, %s40
        %s858 = smul.u32 %s39, 2
        %s859 = sadd.s32 %s858, %s40
        %p860 = scmp.lt.s32.totalorder %s859, 3
        %s861 = scalar_select %p860, %s859, 3
        %s862 = smul.addr %s861, 8
        %s863 = scalar_lea.vmem %s8, %s862
        %s864 = smul.u32 %s39, 2
        %s865 = sadd.s32 %s864, %s40
        %s866 = smul.u32 %s39, 2
        %s867 = sadd.s32 %s866, %s40
        %s868 = smul.u32 %s39, 2
        %s869 = sadd.s32 %s868, %s40
        %s870 = smul.u32 %s39, 2
        %s871 = sadd.s32 %s870, %s40
        %p872 = scmp.lt.s32.totalorder %s39, 1
        %s873 = scalar_select %p872, %s39, 1
        %s874 = scalar_lea.vmem %s12, %s873
        %p875 = scmp.eq.s32.totalorder %s40, 0
        // Predicated region
        $region93: #{tpu_custom_call.1} parent=67 // pred_check
          %p876 = pneg %p875
        $region94: #{tpu_custom_call.1} parent=67 // pred_check_branch
          %878 = sbr.rel (%p876) target = $region96
        $region95: #{tpu_custom_call.1} parent=67 // pred_region
          %vm879 = vcmask 0
          %880 = vst.msk [vmem:[#allocation2] sm:$0x1] %vm879, 0.0
        $region96: #{tpu_custom_call.1} parent=67 // pred_fallthru
          _
        %v881 = vld [vmem:[%s816] sm:$0xff]
        %v882 = vld [vmem:[%s816 + $0x8] sm:$0xff]
        %v883 = vld [vmem:[%s825] sm:$0xff]
        %v884 = vld [vmem:[%s825 + $0x8] sm:$0xff]
        %v885 = vld [vmem:[%s657] sm:$0xff]
        %v886 = vld [vmem:[%s657 + $0x8] sm:$0xff]
        %v887 = vmul.f32 %v881, 1.442695
        %v888 = vpow.pop %v887
        %v889 = vmul.f32 %v882, 1.442695
        %v890 = vpow.pop %v889
        %v891 = vmul.f32 %v883, %v881
        %v892 = vmul.f32 %v884, %v882
        %v893 = vsub.f32 %v888, %v891
        %v894 = vsub.f32 %v890, %v892
        %v895 = vmax.f32 %v883, 1.0
        %v896 = vmax.f32 %v884, 1.0
        %v897 = vlog2.pop %v895
        %v898 = vmul.f32 %v897, 0.6931472
        %v899 = vlog2.pop %v896
        %v900 = vmul.f32 %v899, 0.6931472
        %vm901 = vcmp.gt.f32.partialorder %v883, 1.0
        %vm902 = vcmp.gt.f32.partialorder %v884, 1.0
        %v903 = vadd.f32 %v883, 0.5
        %v904 = vadd.f32 %v884, 0.5
        %v905 = vmul.f32 %v903, %v898
        %v906 = vmul.f32 %v904, %v900
        %v907 = vsub.f32 %v905, %v883
        %v908 = vsub.f32 %v906, %v884
        %v909 = vadd.f32 %v907, 0.9189385
        %v910 = vadd.f32 %v908, 0.9189385
        %v911 = vsel %vm901, %v909, 0.0
        %v912 = vsel %vm902, %v910, 0.0
        %v913 = vadd.f32 %v893, %v911
        %v914 = vadd.f32 %v894, %v912
        %v915 = vmul.f32 %v913, %v885
        %v916 = vmul.f32 %v914, %v886
        %v917 = vadd.f32 %v915, %v916
        %918 = vadd.xlane.f32.xlu0 %v917
        %v919 = vpop.xlane.xlu0 %918
        %v920 = vrot.slane %v919, 4
        %v921 = vadd.f32 %v919, %v920
        %v922 = vrot.slane %v921, 2
        %v923 = vadd.f32 %v921, %v922
        %v924 = vrot.slane %v923, 1
        %v925 = vadd.f32 %v923, %v924
        %s926 = vtos %v925
        %v927 = vld [vmem:[%s667] sm:$0xff]
        %v928 = vld [vmem:[%s667 + $0x8] sm:$0xff]
        %v929 = vld [vmem:[%s667 + $0x10] sm:$0xff]
        %v930 = vld [vmem:[%s677] sm:$0xff]
        %v931 = vld [vmem:[%s677 + $0x8] sm:$0xff]
        %v932 = vld [vmem:[%s677 + $0x10] sm:$0xff]
        %v933 = vlog2.pop %v927
        %v934 = vmul.f32 %v933, 0.6931472
        %v935 = vlog2.pop %v928
        %v936 = vmul.f32 %v935, 0.6931472
        %v937 = vlog2.pop %v929
        %v938 = vmul.f32 %v937, 0.6931472
        %v939 = vmax.f32 %v934, -100.0
        %v940 = vmax.f32 %v936, -100.0
        %v941 = vmax.f32 %v938, -100.0
        %v942 = vsub.f32 1.0, %v927
        %v943 = vsub.f32 1.0, %v928
        %v944 = vsub.f32 1.0, %v929
        %v945 = vlog2.pop %v942
        %v946 = vmul.f32 %v945, 0.6931472
        %v947 = vlog2.pop %v943
        %v948 = vmul.f32 %v947, 0.6931472
        %v949 = vlog2.pop %v944
        %v950 = vmul.f32 %v949, 0.6931472
        %v951 = vmax.f32 %v946, -100.0
        %v952 = vmax.f32 %v948, -100.0
        %v953 = vmax.f32 %v950, -100.0
        %v954 = vsub.f32 %v939, %v951
        %v955 = vsub.f32 %v940, %v952
        %v956 = vsub.f32 %v941, %v953
        %v957 = vmul.f32 %v930, %v954
        %v958 = vmul.f32 %v931, %v955
        %v959 = vmul.f32 %v932, %v956
        %v960 = vadd.f32 %v951, %v957
        %v961 = vadd.f32 %v952, %v958
        %v962 = vadd.f32 %v953, %v959
        %v963 = vadd.f32 %v960, %v961
        %v964 = vadd.f32 %v963, %v962
        %965 = vadd.xlane.f32.xlu0 %v964
        %v966 = vpop.xlane.xlu0 %965
        %v967 = vrot.slane %v966, 4
        %v968 = vadd.f32 %v966, %v967
        %v969 = vrot.slane %v968, 2
        %v970 = vadd.f32 %v968, %v969
        %v971 = vrot.slane %v970, 1
        %v972 = vadd.f32 %v970, %v971
        %s973 = vtos %v972
        %s974 = ssub.f32 0.0, %s973
        %v975 = vld [vmem:[%s839] sm:$0xff]
        %v976 = vld [vmem:[%s847] sm:$0xff]
        %vm977 = vcmask 130048
        %v978 = vsel %vm977, %v975, -inf
        %979 = vmax.xlane.f32.xlu0 %v978
        %v980 = vpop.xlane.xlu0 %979
        %v981 = vsub.f32 %v975, %v980
        %v982 = vmul.f32 %v981, 1.442695
        %v983 = vpow.pop %v982
        %v984 = vsel %vm977, %v983, 0.0
        %985 = vadd.xlane.f32.xlu0 %v984
        %v986 = vpop.xlane.xlu0 %985
        %v987 = vlog2.pop %v986
        %v988 = vmul.f32 %v987, 0.6931472
        %v989 = vadd.f32 %v980, %v988
        %v990 = vlaneseq
        %v991 = vand.u32 %v990, 127
        %992 = vset.pattern.permute.xlu0 0
        %993 = vperm.xlu0 %992, %v976
        %v994 = vpop.permute.xlu0 %993
        %vm995 = vcmp.eq.s32.totalorder %v991, %v994
        %v996 = vsel %vm995, %v975, 0.0
        %v997 = vsel %vm977, %v996, 0.0
        %998 = vadd.xlane.f32.xlu0 %v997
        %v999 = vpop.xlane.xlu0 %998
        %v1000 = vsub.f32 %v989, %v999
        %vm1001 = vcmask 7168
        %v1002 = vsel %vm1001, %v1000, 0.0
        %1003 = vadd.xlane.f32.xlu0 %v1002
        %v1004 = vpop.xlane.xlu0 %1003
        %v1005 = vrot.slane %v1004, 4
        %v1006 = vadd.f32 %v1004, %v1005
        %v1007 = vrot.slane %v1006, 2
        %v1008 = vadd.f32 %v1006, %v1007
        %v1009 = vrot.slane %v1008, 1
        %v1010 = vadd.f32 %v1008, %v1009
        %s1011 = vtos %v1010
        %v1012 = vld [vmem:[%s855] sm:$0xff]
        %v1013 = vld [vmem:[%s863] sm:$0xff]
        %vm1014 = vcmask 31744
        %v1015 = vsel %vm1014, %v1012, -inf
        %1016 = vmax.xlane.f32.xlu0 %v1015
        %v1017 = vpop.xlane.xlu0 %1016
        %v1018 = vsub.f32 %v1012, %v1017
        %v1019 = vmul.f32 %v1018, 1.442695
        %v1020 = vpow.pop %v1019
        %v1021 = vsel %vm1014, %v1020, 0.0
        %1022 = vadd.xlane.f32.xlu0 %v1021
        %v1023 = vpop.xlane.xlu0 %1022
        %v1024 = vlog2.pop %v1023
        %v1025 = vmul.f32 %v1024, 0.6931472
        %v1026 = vadd.f32 %v1017, %v1025
        %1027 = vset.pattern.permute.xlu0 0
        %1028 = vperm.xlu0 %1027, %v1013
        %v1029 = vpop.permute.xlu0 %1028
        %vm1030 = vcmp.eq.s32.totalorder %v991, %v1029
        %v1031 = vsel %vm1030, %v1012, 0.0
        %v1032 = vsel %vm1014, %v1031, 0.0
        %1033 = vadd.xlane.f32.xlu0 %v1032
        %v1034 = vpop.xlane.xlu0 %1033
        %v1035 = vsub.f32 %v1026, %v1034
        %v1036 = vsel %vm1001, %v1035, 0.0
        %1037 = vadd.xlane.f32.xlu0 %v1036
        %v1038 = vpop.xlane.xlu0 %1037
        %v1039 = vrot.slane %v1038, 4
        %v1040 = vadd.f32 %v1038, %v1039
        %v1041 = vrot.slane %v1040, 2
        %v1042 = vadd.f32 %v1040, %v1041
        %v1043 = vrot.slane %v1042, 1
        %v1044 = vadd.f32 %v1042, %v1043
        %s1045 = vtos %v1044
        %v1046 = vld [vmem:[%s687] sm:$0xff]
        %v1047 = vld [vmem:[%s697] sm:$0xff]
        %v1048 = vadd.f32 %v1047, 1.0
        %v1049 = vmul.f32 %v1046, %v1046
        %v1050 = vsub.f32 %v1048, %v1049
        %v1051 = vmul.f32 %v1047, 1.442695
        %v1052 = vpow.pop %v1051
        %v1053 = vsub.f32 %v1050, %v1052
        %v1054 = vmul.f32 %v1053, -0.5
        %vm1055 = vcmp.lt.s32.totalorder %v991, 32
        %v1056 = vsel %vm1055, 1.0, 5.0
        %v1057 = vmul.f32 %v1054, %v1056
        %vm1058 = vcmask 326656
        %v1059 = vsel %vm1058, %v1057, 0.0
        %1060 = vadd.xlane.f32.xlu0 %v1059
        %v1061 = vpop.xlane.xlu0 %1060
        %v1062 = vrot.slane %v1061, 4
        %v1063 = vadd.f32 %v1061, %v1062
        %v1064 = vrot.slane %v1063, 2
        %v1065 = vadd.f32 %v1063, %v1064
        %v1066 = vrot.slane %v1065, 1
        %v1067 = vadd.f32 %v1065, %v1066
        %s1068 = vtos %v1067
        %v1069 = vld [vmem:[%s707] sm:$0xff]
        %v1070 = vld [vmem:[%s707 + $0x8] sm:$0xff]
        %vm1071 = vcmask 261120
        %v1072 = vsel %vm1071, %v1069, 0.0
        %v1073 = vsel %vm1071, %v1070, 0.0
        %v1074 = vadd.f32 %v1072, %v1073
        %v1075 = vmul.f32 %v1069, %v1069
        %v1076 = vmul.f32 %v1070, %v1070
        %v1077 = vsel %vm1071, %v1075, 0.0
        %v1078 = vsel %vm1071, %v1076, 0.0
        %v1079 = vadd.f32 %v1077, %v1078
        %1080 = vadd.xlane.f32.xlu0 %v1079
        %v1081 = vpop.xlane.xlu0 %1080
        %v1082 = vrot.slane %v1081, 4
        %v1083 = vadd.f32 %v1081, %v1082
        %v1084 = vrot.slane %v1083, 2
        %v1085 = vadd.f32 %v1083, %v1084
        %v1086 = vrot.slane %v1085, 1
        %v1087 = vadd.f32 %v1085, %v1086
        %s1088 = vtos %v1087
        %v1089 = vmul.f32 %v1074, %v1074
        %v1090 = vsel %vm1071, %v1089, 0.0
        %1091 = vadd.xlane.f32.xlu0 %v1090
        %v1092 = vpop.xlane.xlu0 %1091
        %v1093 = vrot.slane %v1092, 4
        %v1094 = vadd.f32 %v1092, %v1093
        %v1095 = vrot.slane %v1094, 2
        %v1096 = vadd.f32 %v1094, %v1095
        %v1097 = vrot.slane %v1096, 1
        %v1098 = vadd.f32 %v1096, %v1097
        %s1099 = vtos %v1098
        %s1100 = smul.f32 %s1099, 0.5
        %s1101 = ssub.f32 %s1088, %s1100
        %s1102 = sadd.f32 %s926, %s974
        %s1103 = sadd.f32 %s1102, %s1011
        %s1104 = smul.f32 %s1045, 10.0
        %s1105 = sadd.f32 %s1103, %s1104
        %s1106 = sadd.f32 %s1105, %s1068
        %s1107 = smul.f32 %s1101, 2.0
        %s1108 = sadd.f32 %s1106, %s1107
        %v1109 = vld [vmem:[#allocation2] sm:$0x1]
        %v1110 = vstv %s1108
        %v1111 = vadd.f32 %v1109, %v1110
        %vm1112 = vcmask 0
        %1113 = vst.msk [vmem:[#allocation2] sm:$0x1] %vm1112, %v1111
        %p1114 = scmp.eq.s32.totalorder %s40, 1
        // Predicated region
        $region97: #{tpu_custom_call.1} parent=67 // pred_check
          %p1115 = pneg %p1114
        $region98: #{tpu_custom_call.1} parent=67 // pred_check_branch
          %1117 = sbr.rel (%p1115) target = $region100
        $region99: #{tpu_custom_call.1} parent=67 // pred_region
          %v1118 = vld [vmem:[#allocation2] sm:$0x1]
          %v1119 = vmul.f32 %v1118, 0.03125
          %1120 = vst.msk [vmem:[%s874] sm:$0x1] %vm1112, %v1119
        $region100: #{tpu_custom_call.1} parent=67 // pred_fallthru
          _
        %p1121 = scmp.lt.s32.totalorder %s39, 1
        %s1122 = scalar_select %p1121, %s39, 1
        %s1123 = scalar_lea.vmem %s12, %s1122
        // Predicated region
        $region101: #{tpu_custom_call.1} parent=67 // pred_check
          %p1124 = pneg %p425
        $region102: #{tpu_custom_call.1} parent=67 // pred_check_branch
          %1126 = sbr.rel (%p1124) target = $region104
        $region103: #{tpu_custom_call.1} parent=67 // pred_region
          _
        $region104: #{tpu_custom_call.1} parent=67 // pred_fallthru
          _
      $region68: #{tpu_custom_call.1} parent=5 // pred_fallthru
        _
      %p1127 = scmp.le.s32.totalorder 2, %s30
      // Predicated region
      $region105: #{tpu_custom_call.1} parent=5 // pred_check
        %p1128 = pneg %p1127
      $region106: #{tpu_custom_call.1} parent=5 // pred_check_branch
        %1130 = sbr.rel (%p1128) target = $region108
      $region107: #{tpu_custom_call.1} parent=5 // pred_region
        %s1131 = ssub.s32 %s30, 2
        // Predicated region
        $region109: #{tpu_custom_call.1} parent=107 // pred_check
          %p1132 = pneg %p431
        $region110: #{tpu_custom_call.1} parent=107 // pred_check_branch
          %1134 = sbr.rel (%p1132) target = $region112
        $region111: #{tpu_custom_call.1} parent=107 // pred_region
          %p1135 = scmp.lt.s32.totalorder %s41, 1
          %s1136 = scalar_select %p1135, %s41, 1
          %s1137 = scalar_lea.vmem %s12, %s1136
        $region112: #{tpu_custom_call.1} parent=107 // pred_fallthru
          _
      $region108: #{tpu_custom_call.1} parent=5 // pred_fallthru
        _
    $region6: #{tpu_custom_call.1} parent=1 // loop_footer
      %s34 = sadd.s32 1, %s30
    $region7: #{tpu_custom_call.1} parent=1 // loop_footer_branch
      %29 = sbr.rel target = $region3
    $region8: #{tpu_custom_call.1} parent=1 // loop_exit
      _
    %1138 = vsyncpa [#allocation4], 1
    %s1139 = scalar_lea.sflag [#allocation4], 1
    %1140 = vsyncpa %s1139, 1
    %1141 = vsyncpa [#allocation6], 1
    %s1142 = scalar_lea.sflag [#allocation6], 1
    %1143 = vsyncpa %s1142, 1
    %1144 = vsyncpa [#allocation9], 1
    %s1145 = scalar_lea.sflag [#allocation9], 1
    %1146 = vsyncpa %s1145, 1
    %1147 = vsyncpa [#allocation12], 1
    %s1148 = scalar_lea.sflag [#allocation12], 1
    %1149 = vsyncpa %s1148, 1

</llo_original>
